<compile_context>
chip_gen: v5e
topology: v5e:2x2
jax: 0.10.0
libtpu: 0.0.40
codegen_flags: <defaults>
</compile_context>

<pallas_src>
import functools

import numpy as np

import jax
import jax.numpy as jnp
from jax.experimental import pallas as pl
from jax.experimental.pallas import tpu as pltpu


def _cbam_kernel(x_ref, w1t_ref, b1_ref, w2t_ref, b2x2_ref, mask_ref,
                 wcols_ref, o_ref, *, H, W, K, block_n, off, padw):
    """One block of `block_n` batch samples per grid step.

    x_ref    : (B, C, HW)          VMEM  lane-dense input
    w1t_ref  : (C, Cr)             VMEM  Linear1 weight, transposed
    b1_ref   : (1, Cr)             VMEM
    w2t_ref  : (Cr, C)             VMEM  Linear2 weight, transposed
    b2x2_ref : (1, C)              VMEM  2 * Linear2 bias (avg+max branches fused)
    mask_ref : (K, padw)           VMEM  per-kw column-validity masks (0/1 f32)
    wcols_ref: (K*K, 2*B, 1)       VMEM  per-tap sublane weight columns
                                         (rows [0:B]=max-channel, [B:2B]=mean-channel)
    o_ref    : (B, C, HW)          VMEM  output
    """
    HW = H * W
    pad = (K - 1) // 2
    f32 = jnp.float32
    inv_hw = 1.0 / float(HW)
    B = block_n

    x = x_ref[...].astype(f32)                              # (B, C, HW)
    C = x.shape[1]
    inv_c = 1.0 / float(C)

    # ---------------- ChannelGate (block-vectorized, MXU MLP) ----------------
    avg_p = jnp.sum(x, axis=2) * inv_hw                     # (B, C)
    max_p = jnp.max(x, axis=2)                              # (B, C)
    pooled = jnp.concatenate([avg_p, max_p], axis=0)        # (2B, C)

    h = jnp.maximum(
        jnp.dot(pooled, w1t_ref[...], preferred_element_type=f32) + b1_ref[...],
        0.0)                                                # (2B, Cr)
    hsum = h[:B] + h[B:]                                    # (B, Cr)
    att = (jnp.dot(hsum, w2t_ref[...], preferred_element_type=f32)
           + b2x2_ref[...])                                 # (B, C)
    sig_att = jax.nn.sigmoid(att)                           # (B, C)

    x1 = x * sig_att[:, :, None]                            # (B, C, HW)

    # ---------------- ChannelPool (reduce over C) ----------------
    cmax = jnp.max(x1, axis=1)                              # (B, HW)
    cmean = jnp.sum(x1, axis=1) * inv_c                     # (B, HW)

    # ------ SpatialGate: 7x7 conv (2->1, bias=False) in flat-lane domain -----
    # Max/mean maps are packed along the sublane axis so every tap needs only
    # ONE roll.  The padded buffer has >= pad*W+pad zero lanes on both sides of
    # the data (enforced in the wrapper), so out-of-range row taps read zeros
    # and no circular wrap touches real data.
    data = jnp.concatenate([cmax, cmean], axis=0)           # (2B, HW)
    packed = jnp.concatenate(
        [jnp.zeros((2 * B, off), f32), data,
         jnp.zeros((2 * B, padw - off - HW), f32)], axis=1)  # (2B, padw)

    acc = jnp.zeros((2 * B, padw), f32)
    for kw in range(K):
        inner = jnp.zeros((2 * B, padw), f32)
        for kh in range(K):
            t = kh * K + kw
            shift = (-((kh - pad) * W + (kw - pad))) % padw
            rolled = packed if shift == 0 else pltpu.roll(packed, shift, axis=1)
            inner = inner + wcols_ref[t] * rolled           # (2B,1) * (2B,padw)
        # Column-validity mask for this kw (kills row-boundary bleed).
        acc = acc + inner * mask_ref[kw:kw + 1, :]
    conv = (acc[:B] + acc[B:])[:, off:off + HW]             # (B, HW)

    # InstanceNorm2d(affine=False, eps=1e-5) per sample, then sigmoid.
    mu = jnp.sum(conv, axis=1, keepdims=True) * inv_hw
    diff = conv - mu
    var = jnp.sum(diff * diff, axis=1, keepdims=True) * inv_hw
    s_scale = jax.nn.sigmoid(diff * jax.lax.rsqrt(var + 1e-5))   # (B, HW)

    # ---------------- single output write ----------------
    o_ref[...] = (x1 * s_scale[:, None, :]).astype(o_ref.dtype)


def cbam_forward(x, w1, b1, w2, b2, conv_w, *, block_n=None):
    """x: (N, C, H, W). w1:(Cr,C) b1:(Cr,) w2:(C,Cr) b2:(C,) conv_w:(1,2,K,K)."""
    N, C, H, W = x.shape
    Cr = w1.shape[0]
    K = conv_w.shape[-1]
    HW = H * W
    pad = (K - 1) // 2

    if block_n is None:
        # Target ~1 MiB input blocks, but keep >= 2 grid steps so the
        # "parallel" batch axis can be sharded across v7x's 2 TensorCores.
        bytes_per_sample = C * HW * x.dtype.itemsize
        cap = min(N, max(1, (1 << 20) // max(1, bytes_per_sample)))
        if N >= 2:
            cap = min(cap, max(1, N // 2))
        block_n = max(d for d in range(1, cap + 1) if N % d == 0)
    assert N % block_n == 0

    # Flat-lane padded-buffer geometry (128-aligned data offset).
    off = 128 * pl.cdiv(pad * W + pad, 128)
    padw = off + 128 * pl.cdiv(HW + pad * W + pad, 128)
    # Safety of the roll-based flat conv (no wrap into real data).
    assert off >= pad * W + pad
    assert padw - (off + HW) >= pad * W + pad

    # Lane-dense layout: last dim is H*W.
    x_flat = x.reshape(N, C, HW)
    w1t = jnp.transpose(w1).astype(jnp.float32)              # (C, Cr)
    b1r = b1.reshape(1, Cr).astype(jnp.float32)              # (1, Cr)
    w2t = jnp.transpose(w2).astype(jnp.float32)              # (Cr, C)
    b2x2 = (2.0 * b2).reshape(1, C).astype(jnp.float32)      # (1, C) -- 2*b2 hoisted

    # Host-precomputed per-kw column masks for the flat-lane conv.
    col = (np.arange(padw) - off) % W
    masks = np.zeros((K, padw), np.float32)
    for kw in range(K):
        dw = kw - pad
        masks[kw] = (((col + dw) >= 0) & ((col + dw) < W)).astype(np.float32)
    col_mask = jnp.asarray(masks)

    # Per-tap sublane weight columns: rows [0:block_n] carry the max-channel
    # weight, rows [block_n:2*block_n] carry the mean-channel weight.
    cw = conv_w.reshape(2, K * K).astype(jnp.float32)        # row0=max, row1=mean
    wcols = jnp.concatenate(
        [jnp.broadcast_to(cw[0][:, None, None], (K * K, block_n, 1)),
         jnp.broadcast_to(cw[1][:, None, None], (K * K, block_n, 1))],
        axis=1)                                              # (K*K, 2*block_n, 1)

    kernel = functools.partial(_cbam_kernel, H=H, W=W, K=K,
                               block_n=block_n, off=off, padw=padw)

    out_flat = pl.pallas_call(
        kernel,
        out_shape=jax.ShapeDtypeStruct((N, C, HW), x.dtype),
        grid=(N // block_n,),
        in_specs=[
            pl.BlockSpec((block_n, C, HW), lambda n: (n, 0, 0)),
            pl.BlockSpec((C, Cr), lambda n: (0, 0)),
            pl.BlockSpec((1, Cr), lambda n: (0, 0)),
            pl.BlockSpec((Cr, C), lambda n: (0, 0)),
            pl.BlockSpec((1, C), lambda n: (0, 0)),
            pl.BlockSpec((K, padw), lambda n: (0, 0)),
            pl.BlockSpec((K * K, 2 * block_n, 1), lambda n: (0, 0, 0)),
        ],
        out_specs=pl.BlockSpec((block_n, C, HW), lambda n: (n, 0, 0)),
        compiler_params=pltpu.CompilerParams(
            dimension_semantics=("parallel",),
        ),
    )(x_flat, w1t, b1r, w2t, b2x2, col_mask, wcols)

    return out_flat.reshape(N, C, H, W)


def cbam_reference(x, w1, b1, w2, b2, conv_w):
    """Plain-JAX reference mirroring the PyTorch forward."""
    avg_p = jnp.mean(x, axis=(2, 3))   # (N, C)
    max_p = jnp.max(x, axis=(2, 3))    # (N, C)

    def mlp(p):
        h = jax.nn.relu(p @ w1.T + b1)
        return h @ w2.T + b2

    att = mlp(avg_p) + mlp(max_p)
    x1 = x * jax.nn.sigmoid(att)[:, :, None, None]

    cmax = jnp.max(x1, axis=1, keepdims=True)
    cmean = jnp.mean(x1, axis=1, keepdims=True)
    xc = jnp.concatenate([cmax, cmean], axis=1)             # (N, 2, H, W)
    conv_out = jax.lax.conv_general_dilated(
        xc, conv_w, window_strides=(1, 1), padding=((3, 3), (3, 3)),
        dimension_numbers=("NCHW", "OIHW", "NCHW"))          # (N, 1, H, W)
    mu = jnp.mean(conv_out, axis=(2, 3), keepdims=True)
    var = jnp.mean((conv_out - mu) ** 2, axis=(2, 3), keepdims=True)
    xn = (conv_out - mu) / jnp.sqrt(var + 1e-5)
    return x1 * jax.nn.sigmoid(xn)


if __name__ == "__main__":
    key = jax.random.PRNGKey(0)
    N, C, H, W = 2, 32, 16, 16
    reduction_ratio = 16
    Cr = C // reduction_ratio
    K = 7

    k1, k2, k3, k4, k5, k6 = jax.random.split(key, 6)
    x = jax.random.normal(k1, (N, C, H, W), jnp.float32)
    # Deterministic synthetic parameters (module shapes from __init__).
    w1 = jax.random.normal(k2, (Cr, C), jnp.float32) * 0.2        # Linear(C, C//r)
    b1 = jax.random.normal(k3, (Cr,), jnp.float32) * 0.1
    w2 = jax.random.normal(k4, (C, Cr), jnp.float32) * 0.2        # Linear(C//r, C)
    b2 = jax.random.normal(k5, (C,), jnp.float32) * 0.1
    conv_w = jax.random.normal(k6, (1, 2, K, K), jnp.float32) * 0.1  # Conv2d(2,1,7)

    out = jax.block_until_ready(cbam_forward(x, w1, b1, w2, b2, conv_w))

    ref = cbam_reference(x, w1, b1, w2, b2, conv_w)
    assert out.shape == x.shape and out.dtype == x.dtype
    max_err = float(jnp.max(jnp.abs(out - ref)))
    if max_err > 2e-4:
        raise AssertionError(f"kernel mismatch vs reference: max abs err {max_err}")
    print("KERNEL_OK")
</pallas_src>

<mosaic_0001>
module attributes {stable_mosaic.version = 11 : i64} {
  func.func @_cbam_kernel(%arg0: i32, %arg1: memref<1x32x256xf32, #tpu.memory_space<vmem>>, %arg2: memref<32x2xf32, #tpu.memory_space<vmem>>, %arg3: memref<1x2xf32, #tpu.memory_space<vmem>>, %arg4: memref<2x32xf32, #tpu.memory_space<vmem>>, %arg5: memref<1x32xf32, #tpu.memory_space<vmem>>, %arg6: memref<7x512xf32, #tpu.memory_space<vmem>>, %arg7: memref<49x2x1xf32, #tpu.memory_space<vmem>>, %arg8: memref<1x32x256xf32, #tpu.memory_space<vmem>>) attributes {dimension_semantics = [#tpu.dimension_semantics<parallel>], iteration_bounds = array<i64: 2>, scalar_prefetch = 0 : i64, scratch_operands = 0 : i64, tpu.core_type = #tpu.core_type<tc>, window_params = [{transform_indices = @transform_0, window_bounds = array<i64: 1, 32, 256>}, {pipeline_mode = #tpu.pipeline_mode<synchronous>, transform_indices = @transform_1, window_bounds = array<i64: 32, 2>}, {pipeline_mode = #tpu.pipeline_mode<synchronous>, transform_indices = @transform_2, window_bounds = array<i64: 1, 2>}, {pipeline_mode = #tpu.pipeline_mode<synchronous>, transform_indices = @transform_3, window_bounds = array<i64: 2, 32>}, {pipeline_mode = #tpu.pipeline_mode<synchronous>, transform_indices = @transform_4, window_bounds = array<i64: 1, 32>}, {pipeline_mode = #tpu.pipeline_mode<synchronous>, transform_indices = @transform_5, window_bounds = array<i64: 7, 512>}, {pipeline_mode = #tpu.pipeline_mode<synchronous>, transform_indices = @transform_6, window_bounds = array<i64: 49, 2, 1>}, {transform_indices = @transform_7, window_bounds = array<i64: 1, 32, 256>}]} {
    %c0 = arith.constant 0 : index
    %c0_0 = arith.constant 0 : index
    %c0_1 = arith.constant 0 : index
    %0 = vector.load %arg1[%c0, %c0_0, %c0_1] : memref<1x32x256xf32, #tpu.memory_space<vmem>>, vector<1x32x256xf32>
    %cst = arith.constant dense<0.000000e+00> : vector<1x32xf32>
    %1 = vector.multi_reduction <add>, %0, %cst [2] : vector<1x32x256xf32> to vector<1x32xf32>
    %cst_2 = arith.constant 3.906250e-03 : f32
    %2 = vector.broadcast %cst_2 : f32 to vector<1x32xf32>
    %3 = arith.mulf %1, %2 : vector<1x32xf32>
    %cst_3 = arith.constant dense<0xFF800000> : vector<1x32xf32>
    %4 = vector.multi_reduction <maximumf>, %0, %cst_3 [2] : vector<1x32x256xf32> to vector<1x32xf32>
    %5 = tpu.concatenate %3, %4 in 0 : vector<1x32xf32>, vector<1x32xf32> -> vector<2x32xf32>
    %c0_4 = arith.constant 0 : index
    %c0_5 = arith.constant 0 : index
    %6 = vector.load %arg2[%c0_4, %c0_5] : memref<32x2xf32, #tpu.memory_space<vmem>>, vector<32x2xf32>
    %cst_6 = arith.constant dense<0.000000e+00> : vector<2x2xf32>
    %7 = tpu.matmul %5, %6, %cst_6 {dimension_numbers = #tpu.dot_dimension_numbers<[1], [0], [0], [1], [0, 0, 1, 1], [], []>} : vector<2x32xf32>, vector<32x2xf32>, vector<2x2xf32> -> vector<2x2xf32>
    %c0_7 = arith.constant 0 : index
    %c0_8 = arith.constant 0 : index
    %8 = vector.load %arg3[%c0_7, %c0_8] : memref<1x2xf32, #tpu.memory_space<vmem>>, vector<1x2xf32>
    %9 = vector.broadcast %8 : vector<1x2xf32> to vector<2x2xf32>
    %10 = arith.addf %7, %9 : vector<2x2xf32>
    %cst_9 = arith.constant 0.000000e+00 : f32
    %11 = vector.broadcast %cst_9 : f32 to vector<2x2xf32>
    %12 = arith.maximumf %10, %11 : vector<2x2xf32>
    %13 = vector.extract_strided_slice %12 {offsets = [0, 0], sizes = [1, 2], strides = [1, 1]} : vector<2x2xf32> to vector<1x2xf32>
    %14 = vector.extract_strided_slice %12 {offsets = [1, 0], sizes = [1, 2], strides = [1, 1]} : vector<2x2xf32> to vector<1x2xf32>
    %15 = arith.addf %13, %14 : vector<1x2xf32>
    %c0_10 = arith.constant 0 : index
    %c0_11 = arith.constant 0 : index
    %16 = vector.load %arg4[%c0_10, %c0_11] : memref<2x32xf32, #tpu.memory_space<vmem>>, vector<2x32xf32>
    %cst_12 = arith.constant dense<0.000000e+00> : vector<1x32xf32>
    %17 = tpu.matmul %15, %16, %cst_12 {dimension_numbers = #tpu.dot_dimension_numbers<[1], [0], [0], [1], [0, 0, 1, 1], [], []>} : vector<1x2xf32>, vector<2x32xf32>, vector<1x32xf32> -> vector<1x32xf32>
    %c0_13 = arith.constant 0 : index
    %c0_14 = arith.constant 0 : index
    %18 = vector.load %arg5[%c0_13, %c0_14] : memref<1x32xf32, #tpu.memory_space<vmem>>, vector<1x32xf32>
    %19 = arith.addf %17, %18 : vector<1x32xf32>
    %20 = arith.negf %19 : vector<1x32xf32>
    %21 = math.exp %20 : vector<1x32xf32>
    %cst_15 = arith.constant 1.000000e+00 : f32
    %22 = vector.broadcast %cst_15 : f32 to vector<1x32xf32>
    %23 = arith.addf %22, %21 : vector<1x32xf32>
    %24 = arith.divf %22, %23 : vector<1x32xf32>
    %25 = vector.shape_cast %24 : vector<1x32xf32> to vector<1x32x1xf32>
    %26 = vector.broadcast %25 : vector<1x32x1xf32> to vector<1x32x256xf32>
    %27 = arith.mulf %0, %26 : vector<1x32x256xf32>
    %cst_16 = arith.constant dense<0xFF800000> : vector<1x256xf32>
    %28 = vector.multi_reduction <maximumf>, %27, %cst_16 [1] : vector<1x32x256xf32> to vector<1x256xf32>
    %cst_17 = arith.constant dense<0.000000e+00> : vector<1x256xf32>
    %29 = vector.multi_reduction <add>, %27, %cst_17 [1] : vector<1x32x256xf32> to vector<1x256xf32>
    %cst_18 = arith.constant 3.125000e-02 : f32
    %30 = vector.broadcast %cst_18 : f32 to vector<1x256xf32>
    %31 = arith.mulf %29, %30 : vector<1x256xf32>
    %32 = tpu.concatenate %28, %31 in 0 : vector<1x256xf32>, vector<1x256xf32> -> vector<2x256xf32>
    %cst_19 = arith.constant 0.000000e+00 : f32
    %33 = vector.broadcast %cst_19 : f32 to vector<2x128xf32>
    %cst_20 = arith.constant 0.000000e+00 : f32
    %34 = vector.broadcast %cst_20 : f32 to vector<2x128xf32>
    %35 = tpu.concatenate %33, %32, %34 in 1 : vector<2x128xf32>, vector<2x256xf32>, vector<2x128xf32> -> vector<2x512xf32>
    %cst_21 = arith.constant 0.000000e+00 : f32
    %36 = vector.broadcast %cst_21 : f32 to vector<2x512xf32>
    %cst_22 = arith.constant 0.000000e+00 : f32
    %37 = vector.broadcast %cst_22 : f32 to vector<2x512xf32>
    %c51_i32 = arith.constant 51 : i32
    %38 = tpu.dynamic_rotate %35 by %c51_i32 dim 1 : vector<2x512xf32>, i32 -> vector<2x512xf32>
    %c0_23 = arith.constant 0 : index
    %c0_24 = arith.constant 0 : index
    %c0_25 = arith.constant 0 : index
    %39 = vector.load %arg7[%c0_23, %c0_24, %c0_25] : memref<49x2x1xf32, #tpu.memory_space<vmem>>, vector<1x2x1xf32>
    %40 = vector.shape_cast %39 : vector<1x2x1xf32> to vector<2x1xf32>
    %41 = vector.broadcast %40 : vector<2x1xf32> to vector<2x512xf32>
    %42 = arith.mulf %41, %38 : vector<2x512xf32>
    %43 = arith.addf %37, %42 : vector<2x512xf32>
    %c35_i32 = arith.constant 35 : i32
    %44 = tpu.dynamic_rotate %35 by %c35_i32 dim 1 : vector<2x512xf32>, i32 -> vector<2x512xf32>
    %c7 = arith.constant 7 : index
    %c0_26 = arith.constant 0 : index
    %c0_27 = arith.constant 0 : index
    %45 = vector.load %arg7[%c7, %c0_26, %c0_27] : memref<49x2x1xf32, #tpu.memory_space<vmem>>, vector<1x2x1xf32>
    %46 = vector.shape_cast %45 : vector<1x2x1xf32> to vector<2x1xf32>
    %47 = vector.broadcast %46 : vector<2x1xf32> to vector<2x512xf32>
    %48 = arith.mulf %47, %44 : vector<2x512xf32>
    %49 = arith.addf %43, %48 : vector<2x512xf32>
    %c19_i32 = arith.constant 19 : i32
    %50 = tpu.dynamic_rotate %35 by %c19_i32 dim 1 : vector<2x512xf32>, i32 -> vector<2x512xf32>
    %c14 = arith.constant 14 : index
    %c0_28 = arith.constant 0 : index
    %c0_29 = arith.constant 0 : index
    %51 = vector.load %arg7[%c14, %c0_28, %c0_29] : memref<49x2x1xf32, #tpu.memory_space<vmem>>, vector<1x2x1xf32>
    %52 = vector.shape_cast %51 : vector<1x2x1xf32> to vector<2x1xf32>
    %53 = vector.broadcast %52 : vector<2x1xf32> to vector<2x512xf32>
    %54 = arith.mulf %53, %50 : vector<2x512xf32>
    %55 = arith.addf %49, %54 : vector<2x512xf32>
    %c3_i32 = arith.constant 3 : i32
    %56 = tpu.dynamic_rotate %35 by %c3_i32 dim 1 : vector<2x512xf32>, i32 -> vector<2x512xf32>
    %c21 = arith.constant 21 : index
    %c0_30 = arith.constant 0 : index
    %c0_31 = arith.constant 0 : index
    %57 = vector.load %arg7[%c21, %c0_30, %c0_31] : memref<49x2x1xf32, #tpu.memory_space<vmem>>, vector<1x2x1xf32>
    %58 = vector.shape_cast %57 : vector<1x2x1xf32> to vector<2x1xf32>
    %59 = vector.broadcast %58 : vector<2x1xf32> to vector<2x512xf32>
    %60 = arith.mulf %59, %56 : vector<2x512xf32>
    %61 = arith.addf %55, %60 : vector<2x512xf32>
    %c499_i32 = arith.constant 499 : i32
    %62 = tpu.dynamic_rotate %35 by %c499_i32 dim 1 : vector<2x512xf32>, i32 -> vector<2x512xf32>
    %c28 = arith.constant 28 : index
    %c0_32 = arith.constant 0 : index
    %c0_33 = arith.constant 0 : index
    %63 = vector.load %arg7[%c28, %c0_32, %c0_33] : memref<49x2x1xf32, #tpu.memory_space<vmem>>, vector<1x2x1xf32>
    %64 = vector.shape_cast %63 : vector<1x2x1xf32> to vector<2x1xf32>
    %65 = vector.broadcast %64 : vector<2x1xf32> to vector<2x512xf32>
    %66 = arith.mulf %65, %62 : vector<2x512xf32>
    %67 = arith.addf %61, %66 : vector<2x512xf32>
    %c483_i32 = arith.constant 483 : i32
    %68 = tpu.dynamic_rotate %35 by %c483_i32 dim 1 : vector<2x512xf32>, i32 -> vector<2x512xf32>
    %c35 = arith.constant 35 : index
    %c0_34 = arith.constant 0 : index
    %c0_35 = arith.constant 0 : index
    %69 = vector.load %arg7[%c35, %c0_34, %c0_35] : memref<49x2x1xf32, #tpu.memory_space<vmem>>, vector<1x2x1xf32>
    %70 = vector.shape_cast %69 : vector<1x2x1xf32> to vector<2x1xf32>
    %71 = vector.broadcast %70 : vector<2x1xf32> to vector<2x512xf32>
    %72 = arith.mulf %71, %68 : vector<2x512xf32>
    %73 = arith.addf %67, %72 : vector<2x512xf32>
    %c467_i32 = arith.constant 467 : i32
    %74 = tpu.dynamic_rotate %35 by %c467_i32 dim 1 : vector<2x512xf32>, i32 -> vector<2x512xf32>
    %c42 = arith.constant 42 : index
    %c0_36 = arith.constant 0 : index
    %c0_37 = arith.constant 0 : index
    %75 = vector.load %arg7[%c42, %c0_36, %c0_37] : memref<49x2x1xf32, #tpu.memory_space<vmem>>, vector<1x2x1xf32>
    %76 = vector.shape_cast %75 : vector<1x2x1xf32> to vector<2x1xf32>
    %77 = vector.broadcast %76 : vector<2x1xf32> to vector<2x512xf32>
    %78 = arith.mulf %77, %74 : vector<2x512xf32>
    %79 = arith.addf %73, %78 : vector<2x512xf32>
    %c0_38 = arith.constant 0 : index
    %c0_39 = arith.constant 0 : index
    %80 = vector.load %arg6[%c0_38, %c0_39] : memref<7x512xf32, #tpu.memory_space<vmem>>, vector<1x512xf32>
    %81 = vector.broadcast %80 : vector<1x512xf32> to vector<2x512xf32>
    %82 = arith.mulf %79, %81 : vector<2x512xf32>
    %83 = arith.addf %36, %82 : vector<2x512xf32>
    %cst_40 = arith.constant 0.000000e+00 : f32
    %84 = vector.broadcast %cst_40 : f32 to vector<2x512xf32>
    %c50_i32 = arith.constant 50 : i32
    %85 = tpu.dynamic_rotate %35 by %c50_i32 dim 1 : vector<2x512xf32>, i32 -> vector<2x512xf32>
    %c1 = arith.constant 1 : index
    %c0_41 = arith.constant 0 : index
    %c0_42 = arith.constant 0 : index
    %86 = vector.load %arg7[%c1, %c0_41, %c0_42] : memref<49x2x1xf32, #tpu.memory_space<vmem>>, vector<1x2x1xf32>
    %87 = vector.shape_cast %86 : vector<1x2x1xf32> to vector<2x1xf32>
    %88 = vector.broadcast %87 : vector<2x1xf32> to vector<2x512xf32>
    %89 = arith.mulf %88, %85 : vector<2x512xf32>
    %90 = arith.addf %84, %89 : vector<2x512xf32>
    %c34_i32 = arith.constant 34 : i32
    %91 = tpu.dynamic_rotate %35 by %c34_i32 dim 1 : vector<2x512xf32>, i32 -> vector<2x512xf32>
    %c8 = arith.constant 8 : index
    %c0_43 = arith.constant 0 : index
    %c0_44 = arith.constant 0 : index
    %92 = vector.load %arg7[%c8, %c0_43, %c0_44] : memref<49x2x1xf32, #tpu.memory_space<vmem>>, vector<1x2x1xf32>
    %93 = vector.shape_cast %92 : vector<1x2x1xf32> to vector<2x1xf32>
    %94 = vector.broadcast %93 : vector<2x1xf32> to vector<2x512xf32>
    %95 = arith.mulf %94, %91 : vector<2x512xf32>
    %96 = arith.addf %90, %95 : vector<2x512xf32>
    %c18_i32 = arith.constant 18 : i32
    %97 = tpu.dynamic_rotate %35 by %c18_i32 dim 1 : vector<2x512xf32>, i32 -> vector<2x512xf32>
    %c15 = arith.constant 15 : index
    %c0_45 = arith.constant 0 : index
    %c0_46 = arith.constant 0 : index
    %98 = vector.load %arg7[%c15, %c0_45, %c0_46] : memref<49x2x1xf32, #tpu.memory_space<vmem>>, vector<1x2x1xf32>
    %99 = vector.shape_cast %98 : vector<1x2x1xf32> to vector<2x1xf32>
    %100 = vector.broadcast %99 : vector<2x1xf32> to vector<2x512xf32>
    %101 = arith.mulf %100, %97 : vector<2x512xf32>
    %102 = arith.addf %96, %101 : vector<2x512xf32>
    %c2_i32 = arith.constant 2 : i32
    %103 = tpu.dynamic_rotate %35 by %c2_i32 dim 1 : vector<2x512xf32>, i32 -> vector<2x512xf32>
    %c22 = arith.constant 22 : index
    %c0_47 = arith.constant 0 : index
    %c0_48 = arith.constant 0 : index
    %104 = vector.load %arg7[%c22, %c0_47, %c0_48] : memref<49x2x1xf32, #tpu.memory_space<vmem>>, vector<1x2x1xf32>
    %105 = vector.shape_cast %104 : vector<1x2x1xf32> to vector<2x1xf32>
    %106 = vector.broadcast %105 : vector<2x1xf32> to vector<2x512xf32>
    %107 = arith.mulf %106, %103 : vector<2x512xf32>
    %108 = arith.addf %102, %107 : vector<2x512xf32>
    %c498_i32 = arith.constant 498 : i32
    %109 = tpu.dynamic_rotate %35 by %c498_i32 dim 1 : vector<2x512xf32>, i32 -> vector<2x512xf32>
    %c29 = arith.constant 29 : index
    %c0_49 = arith.constant 0 : index
    %c0_50 = arith.constant 0 : index
    %110 = vector.load %arg7[%c29, %c0_49, %c0_50] : memref<49x2x1xf32, #tpu.memory_space<vmem>>, vector<1x2x1xf32>
    %111 = vector.shape_cast %110 : vector<1x2x1xf32> to vector<2x1xf32>
    %112 = vector.broadcast %111 : vector<2x1xf32> to vector<2x512xf32>
    %113 = arith.mulf %112, %109 : vector<2x512xf32>
    %114 = arith.addf %108, %113 : vector<2x512xf32>
    %c482_i32 = arith.constant 482 : i32
    %115 = tpu.dynamic_rotate %35 by %c482_i32 dim 1 : vector<2x512xf32>, i32 -> vector<2x512xf32>
    %c36 = arith.constant 36 : index
    %c0_51 = arith.constant 0 : index
    %c0_52 = arith.constant 0 : index
    %116 = vector.load %arg7[%c36, %c0_51, %c0_52] : memref<49x2x1xf32, #tpu.memory_space<vmem>>, vector<1x2x1xf32>
    %117 = vector.shape_cast %116 : vector<1x2x1xf32> to vector<2x1xf32>
    %118 = vector.broadcast %117 : vector<2x1xf32> to vector<2x512xf32>
    %119 = arith.mulf %118, %115 : vector<2x512xf32>
    %120 = arith.addf %114, %119 : vector<2x512xf32>
    %c466_i32 = arith.constant 466 : i32
    %121 = tpu.dynamic_rotate %35 by %c466_i32 dim 1 : vector<2x512xf32>, i32 -> vector<2x512xf32>
    %c43 = arith.constant 43 : index
    %c0_53 = arith.constant 0 : index
    %c0_54 = arith.constant 0 : index
    %122 = vector.load %arg7[%c43, %c0_53, %c0_54] : memref<49x2x1xf32, #tpu.memory_space<vmem>>, vector<1x2x1xf32>
    %123 = vector.shape_cast %122 : vector<1x2x1xf32> to vector<2x1xf32>
    %124 = vector.broadcast %123 : vector<2x1xf32> to vector<2x512xf32>
    %125 = arith.mulf %124, %121 : vector<2x512xf32>
    %126 = arith.addf %120, %125 : vector<2x512xf32>
    %c1_55 = arith.constant 1 : index
    %c0_56 = arith.constant 0 : index
    %127 = vector.load %arg6[%c1_55, %c0_56] : memref<7x512xf32, #tpu.memory_space<vmem>>, vector<1x512xf32>
    %128 = vector.broadcast %127 : vector<1x512xf32> to vector<2x512xf32>
    %129 = arith.mulf %126, %128 : vector<2x512xf32>
    %130 = arith.addf %83, %129 : vector<2x512xf32>
    %cst_57 = arith.constant 0.000000e+00 : f32
    %131 = vector.broadcast %cst_57 : f32 to vector<2x512xf32>
    %c49_i32 = arith.constant 49 : i32
    %132 = tpu.dynamic_rotate %35 by %c49_i32 dim 1 : vector<2x512xf32>, i32 -> vector<2x512xf32>
    %c2 = arith.constant 2 : index
    %c0_58 = arith.constant 0 : index
    %c0_59 = arith.constant 0 : index
    %133 = vector.load %arg7[%c2, %c0_58, %c0_59] : memref<49x2x1xf32, #tpu.memory_space<vmem>>, vector<1x2x1xf32>
    %134 = vector.shape_cast %133 : vector<1x2x1xf32> to vector<2x1xf32>
    %135 = vector.broadcast %134 : vector<2x1xf32> to vector<2x512xf32>
    %136 = arith.mulf %135, %132 : vector<2x512xf32>
    %137 = arith.addf %131, %136 : vector<2x512xf32>
    %c33_i32 = arith.constant 33 : i32
    %138 = tpu.dynamic_rotate %35 by %c33_i32 dim 1 : vector<2x512xf32>, i32 -> vector<2x512xf32>
    %c9 = arith.constant 9 : index
    %c0_60 = arith.constant 0 : index
    %c0_61 = arith.constant 0 : index
    %139 = vector.load %arg7[%c9, %c0_60, %c0_61] : memref<49x2x1xf32, #tpu.memory_space<vmem>>, vector<1x2x1xf32>
    %140 = vector.shape_cast %139 : vector<1x2x1xf32> to vector<2x1xf32>
    %141 = vector.broadcast %140 : vector<2x1xf32> to vector<2x512xf32>
    %142 = arith.mulf %141, %138 : vector<2x512xf32>
    %143 = arith.addf %137, %142 : vector<2x512xf32>
    %c17_i32 = arith.constant 17 : i32
    %144 = tpu.dynamic_rotate %35 by %c17_i32 dim 1 : vector<2x512xf32>, i32 -> vector<2x512xf32>
    %c16 = arith.constant 16 : index
    %c0_62 = arith.constant 0 : index
    %c0_63 = arith.constant 0 : index
    %145 = vector.load %arg7[%c16, %c0_62, %c0_63] : memref<49x2x1xf32, #tpu.memory_space<vmem>>, vector<1x2x1xf32>
    %146 = vector.shape_cast %145 : vector<1x2x1xf32> to vector<2x1xf32>
    %147 = vector.broadcast %146 : vector<2x1xf32> to vector<2x512xf32>
    %148 = arith.mulf %147, %144 : vector<2x512xf32>
    %149 = arith.addf %143, %148 : vector<2x512xf32>
    %c1_i32 = arith.constant 1 : i32
    %150 = tpu.dynamic_rotate %35 by %c1_i32 dim 1 : vector<2x512xf32>, i32 -> vector<2x512xf32>
    %c23 = arith.constant 23 : index
    %c0_64 = arith.constant 0 : index
    %c0_65 = arith.constant 0 : index
    %151 = vector.load %arg7[%c23, %c0_64, %c0_65] : memref<49x2x1xf32, #tpu.memory_space<vmem>>, vector<1x2x1xf32>
    %152 = vector.shape_cast %151 : vector<1x2x1xf32> to vector<2x1xf32>
    %153 = vector.broadcast %152 : vector<2x1xf32> to vector<2x512xf32>
    %154 = arith.mulf %153, %150 : vector<2x512xf32>
    %155 = arith.addf %149, %154 : vector<2x512xf32>
    %c497_i32 = arith.constant 497 : i32
    %156 = tpu.dynamic_rotate %35 by %c497_i32 dim 1 : vector<2x512xf32>, i32 -> vector<2x512xf32>
    %c30 = arith.constant 30 : index
    %c0_66 = arith.constant 0 : index
    %c0_67 = arith.constant 0 : index
    %157 = vector.load %arg7[%c30, %c0_66, %c0_67] : memref<49x2x1xf32, #tpu.memory_space<vmem>>, vector<1x2x1xf32>
    %158 = vector.shape_cast %157 : vector<1x2x1xf32> to vector<2x1xf32>
    %159 = vector.broadcast %158 : vector<2x1xf32> to vector<2x512xf32>
    %160 = arith.mulf %159, %156 : vector<2x512xf32>
    %161 = arith.addf %155, %160 : vector<2x512xf32>
    %c481_i32 = arith.constant 481 : i32
    %162 = tpu.dynamic_rotate %35 by %c481_i32 dim 1 : vector<2x512xf32>, i32 -> vector<2x512xf32>
    %c37 = arith.constant 37 : index
    %c0_68 = arith.constant 0 : index
    %c0_69 = arith.constant 0 : index
    %163 = vector.load %arg7[%c37, %c0_68, %c0_69] : memref<49x2x1xf32, #tpu.memory_space<vmem>>, vector<1x2x1xf32>
    %164 = vector.shape_cast %163 : vector<1x2x1xf32> to vector<2x1xf32>
    %165 = vector.broadcast %164 : vector<2x1xf32> to vector<2x512xf32>
    %166 = arith.mulf %165, %162 : vector<2x512xf32>
    %167 = arith.addf %161, %166 : vector<2x512xf32>
    %c465_i32 = arith.constant 465 : i32
    %168 = tpu.dynamic_rotate %35 by %c465_i32 dim 1 : vector<2x512xf32>, i32 -> vector<2x512xf32>
    %c44 = arith.constant 44 : index
    %c0_70 = arith.constant 0 : index
    %c0_71 = arith.constant 0 : index
    %169 = vector.load %arg7[%c44, %c0_70, %c0_71] : memref<49x2x1xf32, #tpu.memory_space<vmem>>, vector<1x2x1xf32>
    %170 = vector.shape_cast %169 : vector<1x2x1xf32> to vector<2x1xf32>
    %171 = vector.broadcast %170 : vector<2x1xf32> to vector<2x512xf32>
    %172 = arith.mulf %171, %168 : vector<2x512xf32>
    %173 = arith.addf %167, %172 : vector<2x512xf32>
    %c2_72 = arith.constant 2 : index
    %c0_73 = arith.constant 0 : index
    %174 = vector.load %arg6[%c2_72, %c0_73] : memref<7x512xf32, #tpu.memory_space<vmem>>, vector<1x512xf32>
    %175 = vector.broadcast %174 : vector<1x512xf32> to vector<2x512xf32>
    %176 = arith.mulf %173, %175 : vector<2x512xf32>
    %177 = arith.addf %130, %176 : vector<2x512xf32>
    %cst_74 = arith.constant 0.000000e+00 : f32
    %178 = vector.broadcast %cst_74 : f32 to vector<2x512xf32>
    %c48_i32 = arith.constant 48 : i32
    %179 = tpu.dynamic_rotate %35 by %c48_i32 dim 1 : vector<2x512xf32>, i32 -> vector<2x512xf32>
    %c3 = arith.constant 3 : index
    %c0_75 = arith.constant 0 : index
    %c0_76 = arith.constant 0 : index
    %180 = vector.load %arg7[%c3, %c0_75, %c0_76] : memref<49x2x1xf32, #tpu.memory_space<vmem>>, vector<1x2x1xf32>
    %181 = vector.shape_cast %180 : vector<1x2x1xf32> to vector<2x1xf32>
    %182 = vector.broadcast %181 : vector<2x1xf32> to vector<2x512xf32>
    %183 = arith.mulf %182, %179 : vector<2x512xf32>
    %184 = arith.addf %178, %183 : vector<2x512xf32>
    %c32_i32 = arith.constant 32 : i32
    %185 = tpu.dynamic_rotate %35 by %c32_i32 dim 1 : vector<2x512xf32>, i32 -> vector<2x512xf32>
    %c10 = arith.constant 10 : index
    %c0_77 = arith.constant 0 : index
    %c0_78 = arith.constant 0 : index
    %186 = vector.load %arg7[%c10, %c0_77, %c0_78] : memref<49x2x1xf32, #tpu.memory_space<vmem>>, vector<1x2x1xf32>
    %187 = vector.shape_cast %186 : vector<1x2x1xf32> to vector<2x1xf32>
    %188 = vector.broadcast %187 : vector<2x1xf32> to vector<2x512xf32>
    %189 = arith.mulf %188, %185 : vector<2x512xf32>
    %190 = arith.addf %184, %189 : vector<2x512xf32>
    %c16_i32 = arith.constant 16 : i32
    %191 = tpu.dynamic_rotate %35 by %c16_i32 dim 1 : vector<2x512xf32>, i32 -> vector<2x512xf32>
    %c17 = arith.constant 17 : index
    %c0_79 = arith.constant 0 : index
    %c0_80 = arith.constant 0 : index
    %192 = vector.load %arg7[%c17, %c0_79, %c0_80] : memref<49x2x1xf32, #tpu.memory_space<vmem>>, vector<1x2x1xf32>
    %193 = vector.shape_cast %192 : vector<1x2x1xf32> to vector<2x1xf32>
    %194 = vector.broadcast %193 : vector<2x1xf32> to vector<2x512xf32>
    %195 = arith.mulf %194, %191 : vector<2x512xf32>
    %196 = arith.addf %190, %195 : vector<2x512xf32>
    %c24 = arith.constant 24 : index
    %c0_81 = arith.constant 0 : index
    %c0_82 = arith.constant 0 : index
    %197 = vector.load %arg7[%c24, %c0_81, %c0_82] : memref<49x2x1xf32, #tpu.memory_space<vmem>>, vector<1x2x1xf32>
    %198 = vector.shape_cast %197 : vector<1x2x1xf32> to vector<2x1xf32>
    %199 = vector.broadcast %198 : vector<2x1xf32> to vector<2x512xf32>
    %200 = arith.mulf %199, %35 : vector<2x512xf32>
    %201 = arith.addf %196, %200 : vector<2x512xf32>
    %c496_i32 = arith.constant 496 : i32
    %202 = tpu.dynamic_rotate %35 by %c496_i32 dim 1 : vector<2x512xf32>, i32 -> vector<2x512xf32>
    %c31 = arith.constant 31 : index
    %c0_83 = arith.constant 0 : index
    %c0_84 = arith.constant 0 : index
    %203 = vector.load %arg7[%c31, %c0_83, %c0_84] : memref<49x2x1xf32, #tpu.memory_space<vmem>>, vector<1x2x1xf32>
    %204 = vector.shape_cast %203 : vector<1x2x1xf32> to vector<2x1xf32>
    %205 = vector.broadcast %204 : vector<2x1xf32> to vector<2x512xf32>
    %206 = arith.mulf %205, %202 : vector<2x512xf32>
    %207 = arith.addf %201, %206 : vector<2x512xf32>
    %c480_i32 = arith.constant 480 : i32
    %208 = tpu.dynamic_rotate %35 by %c480_i32 dim 1 : vector<2x512xf32>, i32 -> vector<2x512xf32>
    %c38 = arith.constant 38 : index
    %c0_85 = arith.constant 0 : index
    %c0_86 = arith.constant 0 : index
    %209 = vector.load %arg7[%c38, %c0_85, %c0_86] : memref<49x2x1xf32, #tpu.memory_space<vmem>>, vector<1x2x1xf32>
    %210 = vector.shape_cast %209 : vector<1x2x1xf32> to vector<2x1xf32>
    %211 = vector.broadcast %210 : vector<2x1xf32> to vector<2x512xf32>
    %212 = arith.mulf %211, %208 : vector<2x512xf32>
    %213 = arith.addf %207, %212 : vector<2x512xf32>
    %c464_i32 = arith.constant 464 : i32
    %214 = tpu.dynamic_rotate %35 by %c464_i32 dim 1 : vector<2x512xf32>, i32 -> vector<2x512xf32>
    %c45 = arith.constant 45 : index
    %c0_87 = arith.constant 0 : index
    %c0_88 = arith.constant 0 : index
    %215 = vector.load %arg7[%c45, %c0_87, %c0_88] : memref<49x2x1xf32, #tpu.memory_space<vmem>>, vector<1x2x1xf32>
    %216 = vector.shape_cast %215 : vector<1x2x1xf32> to vector<2x1xf32>
    %217 = vector.broadcast %216 : vector<2x1xf32> to vector<2x512xf32>
    %218 = arith.mulf %217, %214 : vector<2x512xf32>
    %219 = arith.addf %213, %218 : vector<2x512xf32>
    %c3_89 = arith.constant 3 : index
    %c0_90 = arith.constant 0 : index
    %220 = vector.load %arg6[%c3_89, %c0_90] : memref<7x512xf32, #tpu.memory_space<vmem>>, vector<1x512xf32>
    %221 = vector.broadcast %220 : vector<1x512xf32> to vector<2x512xf32>
    %222 = arith.mulf %219, %221 : vector<2x512xf32>
    %223 = arith.addf %177, %222 : vector<2x512xf32>
    %cst_91 = arith.constant 0.000000e+00 : f32
    %224 = vector.broadcast %cst_91 : f32 to vector<2x512xf32>
    %c47_i32 = arith.constant 47 : i32
    %225 = tpu.dynamic_rotate %35 by %c47_i32 dim 1 : vector<2x512xf32>, i32 -> vector<2x512xf32>
    %c4 = arith.constant 4 : index
    %c0_92 = arith.constant 0 : index
    %c0_93 = arith.constant 0 : index
    %226 = vector.load %arg7[%c4, %c0_92, %c0_93] : memref<49x2x1xf32, #tpu.memory_space<vmem>>, vector<1x2x1xf32>
    %227 = vector.shape_cast %226 : vector<1x2x1xf32> to vector<2x1xf32>
    %228 = vector.broadcast %227 : vector<2x1xf32> to vector<2x512xf32>
    %229 = arith.mulf %228, %225 : vector<2x512xf32>
    %230 = arith.addf %224, %229 : vector<2x512xf32>
    %c31_i32 = arith.constant 31 : i32
    %231 = tpu.dynamic_rotate %35 by %c31_i32 dim 1 : vector<2x512xf32>, i32 -> vector<2x512xf32>
    %c11 = arith.constant 11 : index
    %c0_94 = arith.constant 0 : index
    %c0_95 = arith.constant 0 : index
    %232 = vector.load %arg7[%c11, %c0_94, %c0_95] : memref<49x2x1xf32, #tpu.memory_space<vmem>>, vector<1x2x1xf32>
    %233 = vector.shape_cast %232 : vector<1x2x1xf32> to vector<2x1xf32>
    %234 = vector.broadcast %233 : vector<2x1xf32> to vector<2x512xf32>
    %235 = arith.mulf %234, %231 : vector<2x512xf32>
    %236 = arith.addf %230, %235 : vector<2x512xf32>
    %c15_i32 = arith.constant 15 : i32
    %237 = tpu.dynamic_rotate %35 by %c15_i32 dim 1 : vector<2x512xf32>, i32 -> vector<2x512xf32>
    %c18 = arith.constant 18 : index
    %c0_96 = arith.constant 0 : index
    %c0_97 = arith.constant 0 : index
    %238 = vector.load %arg7[%c18, %c0_96, %c0_97] : memref<49x2x1xf32, #tpu.memory_space<vmem>>, vector<1x2x1xf32>
    %239 = vector.shape_cast %238 : vector<1x2x1xf32> to vector<2x1xf32>
    %240 = vector.broadcast %239 : vector<2x1xf32> to vector<2x512xf32>
    %241 = arith.mulf %240, %237 : vector<2x512xf32>
    %242 = arith.addf %236, %241 : vector<2x512xf32>
    %c511_i32 = arith.constant 511 : i32
    %243 = tpu.dynamic_rotate %35 by %c511_i32 dim 1 : vector<2x512xf32>, i32 -> vector<2x512xf32>
    %c25 = arith.constant 25 : index
    %c0_98 = arith.constant 0 : index
    %c0_99 = arith.constant 0 : index
    %244 = vector.load %arg7[%c25, %c0_98, %c0_99] : memref<49x2x1xf32, #tpu.memory_space<vmem>>, vector<1x2x1xf32>
    %245 = vector.shape_cast %244 : vector<1x2x1xf32> to vector<2x1xf32>
    %246 = vector.broadcast %245 : vector<2x1xf32> to vector<2x512xf32>
    %247 = arith.mulf %246, %243 : vector<2x512xf32>
    %248 = arith.addf %242, %247 : vector<2x512xf32>
    %c495_i32 = arith.constant 495 : i32
    %249 = tpu.dynamic_rotate %35 by %c495_i32 dim 1 : vector<2x512xf32>, i32 -> vector<2x512xf32>
    %c32 = arith.constant 32 : index
    %c0_100 = arith.constant 0 : index
    %c0_101 = arith.constant 0 : index
    %250 = vector.load %arg7[%c32, %c0_100, %c0_101] : memref<49x2x1xf32, #tpu.memory_space<vmem>>, vector<1x2x1xf32>
    %251 = vector.shape_cast %250 : vector<1x2x1xf32> to vector<2x1xf32>
    %252 = vector.broadcast %251 : vector<2x1xf32> to vector<2x512xf32>
    %253 = arith.mulf %252, %249 : vector<2x512xf32>
    %254 = arith.addf %248, %253 : vector<2x512xf32>
    %c479_i32 = arith.constant 479 : i32
    %255 = tpu.dynamic_rotate %35 by %c479_i32 dim 1 : vector<2x512xf32>, i32 -> vector<2x512xf32>
    %c39 = arith.constant 39 : index
    %c0_102 = arith.constant 0 : index
    %c0_103 = arith.constant 0 : index
    %256 = vector.load %arg7[%c39, %c0_102, %c0_103] : memref<49x2x1xf32, #tpu.memory_space<vmem>>, vector<1x2x1xf32>
    %257 = vector.shape_cast %256 : vector<1x2x1xf32> to vector<2x1xf32>
    %258 = vector.broadcast %257 : vector<2x1xf32> to vector<2x512xf32>
    %259 = arith.mulf %258, %255 : vector<2x512xf32>
    %260 = arith.addf %254, %259 : vector<2x512xf32>
    %c463_i32 = arith.constant 463 : i32
    %261 = tpu.dynamic_rotate %35 by %c463_i32 dim 1 : vector<2x512xf32>, i32 -> vector<2x512xf32>
    %c46 = arith.constant 46 : index
    %c0_104 = arith.constant 0 : index
    %c0_105 = arith.constant 0 : index
    %262 = vector.load %arg7[%c46, %c0_104, %c0_105] : memref<49x2x1xf32, #tpu.memory_space<vmem>>, vector<1x2x1xf32>
    %263 = vector.shape_cast %262 : vector<1x2x1xf32> to vector<2x1xf32>
    %264 = vector.broadcast %263 : vector<2x1xf32> to vector<2x512xf32>
    %265 = arith.mulf %264, %261 : vector<2x512xf32>
    %266 = arith.addf %260, %265 : vector<2x512xf32>
    %c4_106 = arith.constant 4 : index
    %c0_107 = arith.constant 0 : index
    %267 = vector.load %arg6[%c4_106, %c0_107] : memref<7x512xf32, #tpu.memory_space<vmem>>, vector<1x512xf32>
    %268 = vector.broadcast %267 : vector<1x512xf32> to vector<2x512xf32>
    %269 = arith.mulf %266, %268 : vector<2x512xf32>
    %270 = arith.addf %223, %269 : vector<2x512xf32>
    %cst_108 = arith.constant 0.000000e+00 : f32
    %271 = vector.broadcast %cst_108 : f32 to vector<2x512xf32>
    %c46_i32 = arith.constant 46 : i32
    %272 = tpu.dynamic_rotate %35 by %c46_i32 dim 1 : vector<2x512xf32>, i32 -> vector<2x512xf32>
    %c5 = arith.constant 5 : index
    %c0_109 = arith.constant 0 : index
    %c0_110 = arith.constant 0 : index
    %273 = vector.load %arg7[%c5, %c0_109, %c0_110] : memref<49x2x1xf32, #tpu.memory_space<vmem>>, vector<1x2x1xf32>
    %274 = vector.shape_cast %273 : vector<1x2x1xf32> to vector<2x1xf32>
    %275 = vector.broadcast %274 : vector<2x1xf32> to vector<2x512xf32>
    %276 = arith.mulf %275, %272 : vector<2x512xf32>
    %277 = arith.addf %271, %276 : vector<2x512xf32>
    %c30_i32 = arith.constant 30 : i32
    %278 = tpu.dynamic_rotate %35 by %c30_i32 dim 1 : vector<2x512xf32>, i32 -> vector<2x512xf32>
    %c12 = arith.constant 12 : index
    %c0_111 = arith.constant 0 : index
    %c0_112 = arith.constant 0 : index
    %279 = vector.load %arg7[%c12, %c0_111, %c0_112] : memref<49x2x1xf32, #tpu.memory_space<vmem>>, vector<1x2x1xf32>
    %280 = vector.shape_cast %279 : vector<1x2x1xf32> to vector<2x1xf32>
    %281 = vector.broadcast %280 : vector<2x1xf32> to vector<2x512xf32>
    %282 = arith.mulf %281, %278 : vector<2x512xf32>
    %283 = arith.addf %277, %282 : vector<2x512xf32>
    %c14_i32 = arith.constant 14 : i32
    %284 = tpu.dynamic_rotate %35 by %c14_i32 dim 1 : vector<2x512xf32>, i32 -> vector<2x512xf32>
    %c19 = arith.constant 19 : index
    %c0_113 = arith.constant 0 : index
    %c0_114 = arith.constant 0 : index
    %285 = vector.load %arg7[%c19, %c0_113, %c0_114] : memref<49x2x1xf32, #tpu.memory_space<vmem>>, vector<1x2x1xf32>
    %286 = vector.shape_cast %285 : vector<1x2x1xf32> to vector<2x1xf32>
    %287 = vector.broadcast %286 : vector<2x1xf32> to vector<2x512xf32>
    %288 = arith.mulf %287, %284 : vector<2x512xf32>
    %289 = arith.addf %283, %288 : vector<2x512xf32>
    %c510_i32 = arith.constant 510 : i32
    %290 = tpu.dynamic_rotate %35 by %c510_i32 dim 1 : vector<2x512xf32>, i32 -> vector<2x512xf32>
    %c26 = arith.constant 26 : index
    %c0_115 = arith.constant 0 : index
    %c0_116 = arith.constant 0 : index
    %291 = vector.load %arg7[%c26, %c0_115, %c0_116] : memref<49x2x1xf32, #tpu.memory_space<vmem>>, vector<1x2x1xf32>
    %292 = vector.shape_cast %291 : vector<1x2x1xf32> to vector<2x1xf32>
    %293 = vector.broadcast %292 : vector<2x1xf32> to vector<2x512xf32>
    %294 = arith.mulf %293, %290 : vector<2x512xf32>
    %295 = arith.addf %289, %294 : vector<2x512xf32>
    %c494_i32 = arith.constant 494 : i32
    %296 = tpu.dynamic_rotate %35 by %c494_i32 dim 1 : vector<2x512xf32>, i32 -> vector<2x512xf32>
    %c33 = arith.constant 33 : index
    %c0_117 = arith.constant 0 : index
    %c0_118 = arith.constant 0 : index
    %297 = vector.load %arg7[%c33, %c0_117, %c0_118] : memref<49x2x1xf32, #tpu.memory_space<vmem>>, vector<1x2x1xf32>
    %298 = vector.shape_cast %297 : vector<1x2x1xf32> to vector<2x1xf32>
    %299 = vector.broadcast %298 : vector<2x1xf32> to vector<2x512xf32>
    %300 = arith.mulf %299, %296 : vector<2x512xf32>
    %301 = arith.addf %295, %300 : vector<2x512xf32>
    %c478_i32 = arith.constant 478 : i32
    %302 = tpu.dynamic_rotate %35 by %c478_i32 dim 1 : vector<2x512xf32>, i32 -> vector<2x512xf32>
    %c40 = arith.constant 40 : index
    %c0_119 = arith.constant 0 : index
    %c0_120 = arith.constant 0 : index
    %303 = vector.load %arg7[%c40, %c0_119, %c0_120] : memref<49x2x1xf32, #tpu.memory_space<vmem>>, vector<1x2x1xf32>
    %304 = vector.shape_cast %303 : vector<1x2x1xf32> to vector<2x1xf32>
    %305 = vector.broadcast %304 : vector<2x1xf32> to vector<2x512xf32>
    %306 = arith.mulf %305, %302 : vector<2x512xf32>
    %307 = arith.addf %301, %306 : vector<2x512xf32>
    %c462_i32 = arith.constant 462 : i32
    %308 = tpu.dynamic_rotate %35 by %c462_i32 dim 1 : vector<2x512xf32>, i32 -> vector<2x512xf32>
    %c47 = arith.constant 47 : index
    %c0_121 = arith.constant 0 : index
    %c0_122 = arith.constant 0 : index
    %309 = vector.load %arg7[%c47, %c0_121, %c0_122] : memref<49x2x1xf32, #tpu.memory_space<vmem>>, vector<1x2x1xf32>
    %310 = vector.shape_cast %309 : vector<1x2x1xf32> to vector<2x1xf32>
    %311 = vector.broadcast %310 : vector<2x1xf32> to vector<2x512xf32>
    %312 = arith.mulf %311, %308 : vector<2x512xf32>
    %313 = arith.addf %307, %312 : vector<2x512xf32>
    %c5_123 = arith.constant 5 : index
    %c0_124 = arith.constant 0 : index
    %314 = vector.load %arg6[%c5_123, %c0_124] : memref<7x512xf32, #tpu.memory_space<vmem>>, vector<1x512xf32>
    %315 = vector.broadcast %314 : vector<1x512xf32> to vector<2x512xf32>
    %316 = arith.mulf %313, %315 : vector<2x512xf32>
    %317 = arith.addf %270, %316 : vector<2x512xf32>
    %cst_125 = arith.constant 0.000000e+00 : f32
    %318 = vector.broadcast %cst_125 : f32 to vector<2x512xf32>
    %c45_i32 = arith.constant 45 : i32
    %319 = tpu.dynamic_rotate %35 by %c45_i32 dim 1 : vector<2x512xf32>, i32 -> vector<2x512xf32>
    %c6 = arith.constant 6 : index
    %c0_126 = arith.constant 0 : index
    %c0_127 = arith.constant 0 : index
    %320 = vector.load %arg7[%c6, %c0_126, %c0_127] : memref<49x2x1xf32, #tpu.memory_space<vmem>>, vector<1x2x1xf32>
    %321 = vector.shape_cast %320 : vector<1x2x1xf32> to vector<2x1xf32>
    %322 = vector.broadcast %321 : vector<2x1xf32> to vector<2x512xf32>
    %323 = arith.mulf %322, %319 : vector<2x512xf32>
    %324 = arith.addf %318, %323 : vector<2x512xf32>
    %c29_i32 = arith.constant 29 : i32
    %325 = tpu.dynamic_rotate %35 by %c29_i32 dim 1 : vector<2x512xf32>, i32 -> vector<2x512xf32>
    %c13 = arith.constant 13 : index
    %c0_128 = arith.constant 0 : index
    %c0_129 = arith.constant 0 : index
    %326 = vector.load %arg7[%c13, %c0_128, %c0_129] : memref<49x2x1xf32, #tpu.memory_space<vmem>>, vector<1x2x1xf32>
    %327 = vector.shape_cast %326 : vector<1x2x1xf32> to vector<2x1xf32>
    %328 = vector.broadcast %327 : vector<2x1xf32> to vector<2x512xf32>
    %329 = arith.mulf %328, %325 : vector<2x512xf32>
    %330 = arith.addf %324, %329 : vector<2x512xf32>
    %c13_i32 = arith.constant 13 : i32
    %331 = tpu.dynamic_rotate %35 by %c13_i32 dim 1 : vector<2x512xf32>, i32 -> vector<2x512xf32>
    %c20 = arith.constant 20 : index
    %c0_130 = arith.constant 0 : index
    %c0_131 = arith.constant 0 : index
    %332 = vector.load %arg7[%c20, %c0_130, %c0_131] : memref<49x2x1xf32, #tpu.memory_space<vmem>>, vector<1x2x1xf32>
    %333 = vector.shape_cast %332 : vector<1x2x1xf32> to vector<2x1xf32>
    %334 = vector.broadcast %333 : vector<2x1xf32> to vector<2x512xf32>
    %335 = arith.mulf %334, %331 : vector<2x512xf32>
    %336 = arith.addf %330, %335 : vector<2x512xf32>
    %c509_i32 = arith.constant 509 : i32
    %337 = tpu.dynamic_rotate %35 by %c509_i32 dim 1 : vector<2x512xf32>, i32 -> vector<2x512xf32>
    %c27 = arith.constant 27 : index
    %c0_132 = arith.constant 0 : index
    %c0_133 = arith.constant 0 : index
    %338 = vector.load %arg7[%c27, %c0_132, %c0_133] : memref<49x2x1xf32, #tpu.memory_space<vmem>>, vector<1x2x1xf32>
    %339 = vector.shape_cast %338 : vector<1x2x1xf32> to vector<2x1xf32>
    %340 = vector.broadcast %339 : vector<2x1xf32> to vector<2x512xf32>
    %341 = arith.mulf %340, %337 : vector<2x512xf32>
    %342 = arith.addf %336, %341 : vector<2x512xf32>
    %c493_i32 = arith.constant 493 : i32
    %343 = tpu.dynamic_rotate %35 by %c493_i32 dim 1 : vector<2x512xf32>, i32 -> vector<2x512xf32>
    %c34 = arith.constant 34 : index
    %c0_134 = arith.constant 0 : index
    %c0_135 = arith.constant 0 : index
    %344 = vector.load %arg7[%c34, %c0_134, %c0_135] : memref<49x2x1xf32, #tpu.memory_space<vmem>>, vector<1x2x1xf32>
    %345 = vector.shape_cast %344 : vector<1x2x1xf32> to vector<2x1xf32>
    %346 = vector.broadcast %345 : vector<2x1xf32> to vector<2x512xf32>
    %347 = arith.mulf %346, %343 : vector<2x512xf32>
    %348 = arith.addf %342, %347 : vector<2x512xf32>
    %c477_i32 = arith.constant 477 : i32
    %349 = tpu.dynamic_rotate %35 by %c477_i32 dim 1 : vector<2x512xf32>, i32 -> vector<2x512xf32>
    %c41 = arith.constant 41 : index
    %c0_136 = arith.constant 0 : index
    %c0_137 = arith.constant 0 : index
    %350 = vector.load %arg7[%c41, %c0_136, %c0_137] : memref<49x2x1xf32, #tpu.memory_space<vmem>>, vector<1x2x1xf32>
    %351 = vector.shape_cast %350 : vector<1x2x1xf32> to vector<2x1xf32>
    %352 = vector.broadcast %351 : vector<2x1xf32> to vector<2x512xf32>
    %353 = arith.mulf %352, %349 : vector<2x512xf32>
    %354 = arith.addf %348, %353 : vector<2x512xf32>
    %c461_i32 = arith.constant 461 : i32
    %355 = tpu.dynamic_rotate %35 by %c461_i32 dim 1 : vector<2x512xf32>, i32 -> vector<2x512xf32>
    %c48 = arith.constant 48 : index
    %c0_138 = arith.constant 0 : index
    %c0_139 = arith.constant 0 : index
    %356 = vector.load %arg7[%c48, %c0_138, %c0_139] : memref<49x2x1xf32, #tpu.memory_space<vmem>>, vector<1x2x1xf32>
    %357 = vector.shape_cast %356 : vector<1x2x1xf32> to vector<2x1xf32>
    %358 = vector.broadcast %357 : vector<2x1xf32> to vector<2x512xf32>
    %359 = arith.mulf %358, %355 : vector<2x512xf32>
    %360 = arith.addf %354, %359 : vector<2x512xf32>
    %c6_140 = arith.constant 6 : index
    %c0_141 = arith.constant 0 : index
    %361 = vector.load %arg6[%c6_140, %c0_141] : memref<7x512xf32, #tpu.memory_space<vmem>>, vector<1x512xf32>
    %362 = vector.broadcast %361 : vector<1x512xf32> to vector<2x512xf32>
    %363 = arith.mulf %360, %362 : vector<2x512xf32>
    %364 = arith.addf %317, %363 : vector<2x512xf32>
    %365 = vector.extract_strided_slice %364 {offsets = [0, 0], sizes = [1, 512], strides = [1, 1]} : vector<2x512xf32> to vector<1x512xf32>
    %366 = vector.extract_strided_slice %364 {offsets = [1, 0], sizes = [1, 512], strides = [1, 1]} : vector<2x512xf32> to vector<1x512xf32>
    %367 = arith.addf %365, %366 : vector<1x512xf32>
    %368 = vector.extract_strided_slice %367 {offsets = [0, 128], sizes = [1, 256], strides = [1, 1]} : vector<1x512xf32> to vector<1x256xf32>
    %cst_142 = arith.constant dense<0.000000e+00> : vector<1xf32>
    %369 = vector.multi_reduction <add>, %368, %cst_142 [1] : vector<1x256xf32> to vector<1xf32>
    %370 = vector.shape_cast %369 : vector<1xf32> to vector<1x1xf32>
    %cst_143 = arith.constant 3.906250e-03 : f32
    %371 = vector.broadcast %cst_143 : f32 to vector<1x1xf32>
    %372 = arith.mulf %370, %371 : vector<1x1xf32>
    %373 = vector.broadcast %372 : vector<1x1xf32> to vector<1x256xf32>
    %374 = arith.subf %368, %373 : vector<1x256xf32>
    %375 = arith.mulf %374, %374 : vector<1x256xf32>
    %cst_144 = arith.constant dense<0.000000e+00> : vector<1xf32>
    %376 = vector.multi_reduction <add>, %375, %cst_144 [1] : vector<1x256xf32> to vector<1xf32>
    %377 = vector.shape_cast %376 : vector<1xf32> to vector<1x1xf32>
    %cst_145 = arith.constant 3.906250e-03 : f32
    %378 = vector.broadcast %cst_145 : f32 to vector<1x1xf32>
    %379 = arith.mulf %377, %378 : vector<1x1xf32>
    %cst_146 = arith.constant 9.99999974E-6 : f32
    %380 = vector.broadcast %cst_146 : f32 to vector<1x1xf32>
    %381 = arith.addf %379, %380 : vector<1x1xf32>
    %382 = math.rsqrt %381 : vector<1x1xf32>
    %383 = vector.broadcast %382 : vector<1x1xf32> to vector<1x256xf32>
    %384 = arith.mulf %374, %383 : vector<1x256xf32>
    %385 = arith.negf %384 : vector<1x256xf32>
    %386 = math.exp %385 : vector<1x256xf32>
    %cst_147 = arith.constant 1.000000e+00 : f32
    %387 = vector.broadcast %cst_147 : f32 to vector<1x256xf32>
    %388 = arith.addf %387, %386 : vector<1x256xf32>
    %389 = arith.divf %387, %388 : vector<1x256xf32>
    %390 = vector.shape_cast %389 : vector<1x256xf32> to vector<1x1x256xf32>
    %391 = vector.broadcast %390 : vector<1x1x256xf32> to vector<1x32x256xf32>
    %392 = arith.mulf %27, %391 : vector<1x32x256xf32>
    %c0_148 = arith.constant 0 : index
    %c0_149 = arith.constant 0 : index
    %c0_150 = arith.constant 0 : index
    %393 = vector.load %arg8[%c0_148, %c0_149, %c0_150] : memref<1x32x256xf32, #tpu.memory_space<vmem>>, vector<1x32x256xf32>
    tpu.vector_store %arg8[%c0_148, %c0_149, %c0_150], %392 {strides = array<i32>} : memref<1x32x256xf32, #tpu.memory_space<vmem>>, vector<1x32x256xf32>,
    return
  }
  func.func @transform_0(%arg0: i32) -> (i32, i32, i32) {
    %c0_i32 = arith.constant 0 : i32
    %c0_i32_0 = arith.constant 0 : i32
    %c0_i32_1 = arith.constant 0 : i32
    return %arg0, %c0_i32, %c0_i32_0 : i32, i32, i32
  }
  func.func @transform_1(%arg0: i32) -> (i32, i32) {
    %c0_i32 = arith.constant 0 : i32
    %c0_i32_0 = arith.constant 0 : i32
    %c0_i32_1 = arith.constant 0 : i32
    return %c0_i32, %c0_i32_0 : i32, i32
  }
  func.func @transform_2(%arg0: i32) -> (i32, i32) {
    %c0_i32 = arith.constant 0 : i32
    %c0_i32_0 = arith.constant 0 : i32
    %c0_i32_1 = arith.constant 0 : i32
    return %c0_i32, %c0_i32_0 : i32, i32
  }
  func.func @transform_3(%arg0: i32) -> (i32, i32) {
    %c0_i32 = arith.constant 0 : i32
    %c0_i32_0 = arith.constant 0 : i32
    %c0_i32_1 = arith.constant 0 : i32
    return %c0_i32, %c0_i32_0 : i32, i32
  }
  func.func @transform_4(%arg0: i32) -> (i32, i32) {
    %c0_i32 = arith.constant 0 : i32
    %c0_i32_0 = arith.constant 0 : i32
    %c0_i32_1 = arith.constant 0 : i32
    return %c0_i32, %c0_i32_0 : i32, i32
  }
  func.func @transform_5(%arg0: i32) -> (i32, i32) {
    %c0_i32 = arith.constant 0 : i32
    %c0_i32_0 = arith.constant 0 : i32
    %c0_i32_1 = arith.constant 0 : i32
    return %c0_i32, %c0_i32_0 : i32, i32
  }
  func.func @transform_6(%arg0: i32) -> (i32, i32, i32) {
    %c0_i32 = arith.constant 0 : i32
    %c0_i32_0 = arith.constant 0 : i32
    %c0_i32_1 = arith.constant 0 : i32
    %c0_i32_2 = arith.constant 0 : i32
    return %c0_i32, %c0_i32_0, %c0_i32_1 : i32, i32, i32
  }
  func.func @transform_7(%arg0: i32) -> (i32, i32, i32) {
    %c0_i32 = arith.constant 0 : i32
    %c0_i32_0 = arith.constant 0 : i32
    %c0_i32_1 = arith.constant 0 : i32
    return %arg0, %c0_i32, %c0_i32_0 : i32, i32, i32
  }
}

</mosaic_0001>

<llo_original>
// kernel: tpu_custom_call.1
$region0: #{tpu_custom_call.1}
  #allocation0 [shape = 'u32[]', space=smem, size = 0x4, offset = 0x4, fixed_abs, tag = 'smem constant byte address 0x4 - core index']
  #allocation1 [shape = 'u32[72,128]{1,0:T(1,128)}', space=vmem, size = 0x9000, scoped, tag = 'internal scratch']
  %s0 = inlined_call_operand.vmem [shape: f32[2,32,256], index: 0, kind: input, shape index: {}]
  %s1 = inlined_call_operand.vmem [shape: f32[32,2], index: 1, kind: input, shape index: {}]
  %s2 = inlined_call_operand.vmem [shape: f32[1,2], index: 2, kind: input, shape index: {}]
  %s3 = inlined_call_operand.vmem [shape: f32[2,32], index: 3, kind: input, shape index: {}]
  %s4 = inlined_call_operand.vmem [shape: f32[1,32], index: 4, kind: input, shape index: {}]
  %s5 = inlined_call_operand.hbm [shape: f32[7,512], index: 5, kind: input, shape index: {}]
  %s6 = inlined_call_operand.vmem [shape: f32[49,2,1], index: 6, kind: input, shape index: {}]
  %s7 = inlined_call_operand.hbm [shape: f32[2,32,256], index: 7, kind: output, shape index: {}]
  %s8 = sld [smem:[#allocation0]]
  $region65: #{tpu_custom_call.1} parent=0
    _
  %s10 = ssub.s32 1, %s8
  %s11 = scalar_select 0, %s10, %s8
  $region1: #{tpu_custom_call.1} parent=0
    #allocation2 [shape = 'u8[16384]{0}', space=vmem, size = 0x4000, scoped, tag = 'input window, operand 5, single buffered']
    #allocation3 [shape = 's32[2]{0}', space=sflag, size = 0x8, scoped, tag = 'scoped memory for tpu_custom_call.1']
    #allocation4 [shape = 's32[2]{0}', space=sflag, size = 0x8, scoped, tag = 'scoped memory for tpu_custom_call.1']
    #allocation5 [shape = 'u8[65536]{0}', space=vmem, size = 0x10000, scoped, tag = 'output window, operand 0']
    %12 = vsyncpa [#allocation3], 0
    %13 = vsyncpa [#allocation4], 0
    %s14 = scalar_lea.sflag [#allocation4], 1
    %15 = vsyncpa %s14, 0
    loop: start=0, step=1, limit=4
    $region2: #{tpu_custom_call.1} parent=1 // loop_pre_header
      _
    $region3: #{tpu_custom_call.1} parent=1 // loop_header
      %s17 = sphi 0, %s21
      %p18 = scmp.ge.s32.totalorder %s17, 4
      %s27 = sphi 0, %s29
      %s30 = sphi 0, %s27
      %s31 = sphi 0, %s30
      %s47 = sphi 0, %s31
      %s51 = sphi 0, %s51
      %s53 = sphi 0, %s51
      %s54 = sphi 0, %s53
      %s68 = sphi 0, %s54
      %s72 = sphi 0, %s72
      %s74 = sphi 0, %s72
      %s75 = sphi 0, %s74
      %s89 = sphi 0, %s75
      %s93 = sphi 0, %s93
      %s95 = sphi 0, %s93
      %s96 = sphi 0, %s95
      %s110 = sphi 0, %s96
      %s114 = sphi 0, %s114
      %s116 = sphi 0, %s114
      %s117 = sphi 0, %s116
      %s131 = sphi 0, %s117
      %s135 = sphi 0, %s135
      %s137 = sphi 0, %s135
      %s138 = sphi 0, %s137
      %s152 = sphi 0, %s138
      %s156 = sphi 0, %s156
      %s158 = sphi 0, %s156
      %s159 = sphi 0, %s158
      %s173 = sphi 0, %s159
      %s179 = sphi 0, %s181
      %s182 = sphi 0, %s179
      %s183 = sphi 0, %s182
      %s199 = sphi 0, %s183
    $region4: #{tpu_custom_call.1} parent=1 // loop_header_branch
      %20 = sbr.rel (%p18) target = $region8
    $region5: #{tpu_custom_call.1} parent=1 // loop_body
      %s22 = ssub.s32 %s17, 1
      %s23 = ssub.s32 %s17, 2
      %s24 = sadd.s32 %s17, 1
      %s25 = ssub.s32 %s17, %s24
      %p26 = scmp.eq.s32.totalorder %s25, 0
      %s28 = sadd.s32 %s27, 1
      %s29 = scalar_select %p26, %s27, %s28
      %p32 = pneg %p26
      %p33 = scmp.eq.s32.totalorder %s17, 1
      %p34 = por %p32, %p33
      %p35 = scmp.ne.s32.totalorder %s27, %s30
      %p36 = scmp.eq.s32.totalorder %s17, 0
      %p37 = por %p35, %p36
      %p38 = scmp.ne.s32.totalorder %s27, %s30
      %p39 = scmp.eq.s32.totalorder %s22, 1
      %p40 = por %p38, %p39
      %p41 = scmp.ne.s32.totalorder %s30, %s31
      %p42 = scmp.eq.s32.totalorder %s22, 0
      %p43 = por %p41, %p42
      %p44 = scmp.ne.s32.totalorder %s30, %s31
      %p45 = scmp.eq.s32.totalorder %s23, 1
      %p46 = por %p44, %p45
      %p48 = scmp.ne.s32.totalorder %s31, %s47
      %p49 = scmp.eq.s32.totalorder %s23, 0
      %p50 = por %p48, %p49
      %s52 = sadd.s32 %s51, 1
      %p55 = scmp.eq.s32.totalorder %s17, 1
      %p56 = scmp.ne.s32.totalorder %s51, %s53
      %p57 = scmp.eq.s32.totalorder %s17, 0
      %p58 = por %p56, %p57
      %p59 = scmp.ne.s32.totalorder %s51, %s53
      %p60 = scmp.eq.s32.totalorder %s22, 1
      %p61 = por %p59, %p60
      %p62 = scmp.ne.s32.totalorder %s53, %s54
      %p63 = scmp.eq.s32.totalorder %s22, 0
      %p64 = por %p62, %p63
      %p65 = scmp.ne.s32.totalorder %s53, %s54
      %p66 = scmp.eq.s32.totalorder %s23, 1
      %p67 = por %p65, %p66
      %p69 = scmp.ne.s32.totalorder %s54, %s68
      %p70 = scmp.eq.s32.totalorder %s23, 0
      %p71 = por %p69, %p70
      %s73 = sadd.s32 %s72, 1
      %p76 = scmp.eq.s32.totalorder %s17, 1
      %p77 = scmp.ne.s32.totalorder %s72, %s74
      %p78 = scmp.eq.s32.totalorder %s17, 0
      %p79 = por %p77, %p78
      %p80 = scmp.ne.s32.totalorder %s72, %s74
      %p81 = scmp.eq.s32.totalorder %s22, 1
      %p82 = por %p80, %p81
      %p83 = scmp.ne.s32.totalorder %s74, %s75
      %p84 = scmp.eq.s32.totalorder %s22, 0
      %p85 = por %p83, %p84
      %p86 = scmp.ne.s32.totalorder %s74, %s75
      %p87 = scmp.eq.s32.totalorder %s23, 1
      %p88 = por %p86, %p87
      %p90 = scmp.ne.s32.totalorder %s75, %s89
      %p91 = scmp.eq.s32.totalorder %s23, 0
      %p92 = por %p90, %p91
      %s94 = sadd.s32 %s93, 1
      %p97 = scmp.eq.s32.totalorder %s17, 1
      %p98 = scmp.ne.s32.totalorder %s93, %s95
      %p99 = scmp.eq.s32.totalorder %s17, 0
      %p100 = por %p98, %p99
      %p101 = scmp.ne.s32.totalorder %s93, %s95
      %p102 = scmp.eq.s32.totalorder %s22, 1
      %p103 = por %p101, %p102
      %p104 = scmp.ne.s32.totalorder %s95, %s96
      %p105 = scmp.eq.s32.totalorder %s22, 0
      %p106 = por %p104, %p105
      %p107 = scmp.ne.s32.totalorder %s95, %s96
      %p108 = scmp.eq.s32.totalorder %s23, 1
      %p109 = por %p107, %p108
      %p111 = scmp.ne.s32.totalorder %s96, %s110
      %p112 = scmp.eq.s32.totalorder %s23, 0
      %p113 = por %p111, %p112
      %s115 = sadd.s32 %s114, 1
      %p118 = scmp.eq.s32.totalorder %s17, 1
      %p119 = scmp.ne.s32.totalorder %s114, %s116
      %p120 = scmp.eq.s32.totalorder %s17, 0
      %p121 = por %p119, %p120
      %p122 = scmp.ne.s32.totalorder %s114, %s116
      %p123 = scmp.eq.s32.totalorder %s22, 1
      %p124 = por %p122, %p123
      %p125 = scmp.ne.s32.totalorder %s116, %s117
      %p126 = scmp.eq.s32.totalorder %s22, 0
      %p127 = por %p125, %p126
      %p128 = scmp.ne.s32.totalorder %s116, %s117
      %p129 = scmp.eq.s32.totalorder %s23, 1
      %p130 = por %p128, %p129
      %p132 = scmp.ne.s32.totalorder %s117, %s131
      %p133 = scmp.eq.s32.totalorder %s23, 0
      %p134 = por %p132, %p133
      %s136 = sadd.s32 %s135, 1
      %p139 = scmp.eq.s32.totalorder %s17, 1
      %p140 = scmp.ne.s32.totalorder %s135, %s137
      %p141 = scmp.eq.s32.totalorder %s17, 0
      %p142 = por %p140, %p141
      %p143 = scmp.ne.s32.totalorder %s135, %s137
      %p144 = scmp.eq.s32.totalorder %s22, 1
      %p145 = por %p143, %p144
      %p146 = scmp.ne.s32.totalorder %s137, %s138
      %p147 = scmp.eq.s32.totalorder %s22, 0
      %p148 = por %p146, %p147
      %p149 = scmp.ne.s32.totalorder %s137, %s138
      %p150 = scmp.eq.s32.totalorder %s23, 1
      %p151 = por %p149, %p150
      %p153 = scmp.ne.s32.totalorder %s138, %s152
      %p154 = scmp.eq.s32.totalorder %s23, 0
      %p155 = por %p153, %p154
      %s157 = sadd.s32 %s156, 1
      %p160 = scmp.eq.s32.totalorder %s17, 1
      %p161 = scmp.ne.s32.totalorder %s156, %s158
      %p162 = scmp.eq.s32.totalorder %s17, 0
      %p163 = por %p161, %p162
      %p164 = scmp.ne.s32.totalorder %s156, %s158
      %p165 = scmp.eq.s32.totalorder %s22, 1
      %p166 = por %p164, %p165
      %p167 = scmp.ne.s32.totalorder %s158, %s159
      %p168 = scmp.eq.s32.totalorder %s22, 0
      %p169 = por %p167, %p168
      %p170 = scmp.ne.s32.totalorder %s158, %s159
      %p171 = scmp.eq.s32.totalorder %s23, 1
      %p172 = por %p170, %p171
      %p174 = scmp.ne.s32.totalorder %s159, %s173
      %p175 = scmp.eq.s32.totalorder %s23, 0
      %p176 = por %p174, %p175
      %s177 = ssub.s32 %s17, %s24
      %p178 = scmp.eq.s32.totalorder %s177, 0
      %s180 = sadd.s32 %s179, 1
      %s181 = scalar_select %p178, %s179, %s180
      %p184 = pneg %p178
      %p185 = scmp.eq.s32.totalorder %s17, 1
      %p186 = por %p184, %p185
      %p187 = scmp.ne.s32.totalorder %s179, %s182
      %p188 = scmp.eq.s32.totalorder %s17, 0
      %p189 = por %p187, %p188
      %p190 = scmp.ne.s32.totalorder %s179, %s182
      %p191 = scmp.eq.s32.totalorder %s22, 1
      %p192 = por %p190, %p191
      %p193 = scmp.ne.s32.totalorder %s182, %s183
      %p194 = scmp.eq.s32.totalorder %s22, 0
      %p195 = por %p193, %p194
      %p196 = scmp.ne.s32.totalorder %s182, %s183
      %p197 = scmp.eq.s32.totalorder %s23, 1
      %p198 = por %p196, %p197
      %p200 = scmp.ne.s32.totalorder %s183, %s199
      %p201 = scmp.eq.s32.totalorder %s23, 0
      %p202 = por %p200, %p201
      %p203 = scmp.le.s32.totalorder 1, %s17
      %p204 = scmp.lt.s32.totalorder %s17, 3
      %p205 = pnand %p203, %p204
      %p206 = pneg %p205
      // Predicated region
      $region9: #{tpu_custom_call.1} parent=5 // pred_check
        _
      $region10: #{tpu_custom_call.1} parent=5 // pred_check_branch
        %208 = sbr.rel (%p205) target = $region12
      $region11: #{tpu_custom_call.1} parent=5 // pred_region
        %s209 = ssub.s32 %s17, 1
        // Predicated region
        $region13: #{tpu_custom_call.1} parent=11 // pred_check
          %p210 = pneg %p64
        $region14: #{tpu_custom_call.1} parent=11 // pred_check_branch
          %212 = sbr.rel (%p210) target = $region16
        $region15: #{tpu_custom_call.1} parent=11 // pred_region
          _
        $region16: #{tpu_custom_call.1} parent=11 // pred_fallthru
          _
        // Predicated region
        $region17: #{tpu_custom_call.1} parent=11 // pred_check
          %p213 = pneg %p85
        $region18: #{tpu_custom_call.1} parent=11 // pred_check_branch
          %215 = sbr.rel (%p213) target = $region20
        $region19: #{tpu_custom_call.1} parent=11 // pred_region
          _
        $region20: #{tpu_custom_call.1} parent=11 // pred_fallthru
          _
        // Predicated region
        $region21: #{tpu_custom_call.1} parent=11 // pred_check
          %p216 = pneg %p106
        $region22: #{tpu_custom_call.1} parent=11 // pred_check_branch
          %218 = sbr.rel (%p216) target = $region24
        $region23: #{tpu_custom_call.1} parent=11 // pred_region
          _
        $region24: #{tpu_custom_call.1} parent=11 // pred_fallthru
          _
        // Predicated region
        $region25: #{tpu_custom_call.1} parent=11 // pred_check
          %p219 = pneg %p127
        $region26: #{tpu_custom_call.1} parent=11 // pred_check_branch
          %221 = sbr.rel (%p219) target = $region28
        $region27: #{tpu_custom_call.1} parent=11 // pred_region
          _
        $region28: #{tpu_custom_call.1} parent=11 // pred_fallthru
          _
        // Predicated region
        $region29: #{tpu_custom_call.1} parent=11 // pred_check
          %p222 = pneg %p148
        $region30: #{tpu_custom_call.1} parent=11 // pred_check_branch
          %224 = sbr.rel (%p222) target = $region32
        $region31: #{tpu_custom_call.1} parent=11 // pred_region
          %226 = vsyncadd [#allocation3], 0
          %s228 = sshll.u32 %s5, 4
          %s229 = int_to_ptr.hbm [resolvable:$true] %s228
          %s230 = sshll.u32 [#allocation2], 4
          %s231 = int_to_ptr.vmem [resolvable:$true] %s230
          %233 = dma.hbm_to_vmem [thread:$0]  %s229, 512, %s231, [#allocation3]
        $region32: #{tpu_custom_call.1} parent=11 // pred_fallthru
          _
        // Predicated region
        $region33: #{tpu_custom_call.1} parent=11 // pred_check
          %p234 = pneg %p169
        $region34: #{tpu_custom_call.1} parent=11 // pred_check_branch
          %236 = sbr.rel (%p234) target = $region36
        $region35: #{tpu_custom_call.1} parent=11 // pred_region
          _
        $region36: #{tpu_custom_call.1} parent=11 // pred_fallthru
          _
      $region12: #{tpu_custom_call.1} parent=5 // pred_fallthru
        _
      %p237 = scmp.lt.s32.totalorder %s17, 2
      // Predicated region
      $region37: #{tpu_custom_call.1} parent=5 // pred_check
        %p238 = pneg %p237
      $region38: #{tpu_custom_call.1} parent=5 // pred_check_branch
        %240 = sbr.rel (%p238) target = $region40
      $region39: #{tpu_custom_call.1} parent=5 // pred_region
        // Predicated region
        $region41: #{tpu_custom_call.1} parent=39 // pred_check
          %p241 = pneg %p37
        $region42: #{tpu_custom_call.1} parent=39 // pred_check_branch
          %243 = sbr.rel (%p241) target = $region44
        $region43: #{tpu_custom_call.1} parent=39 // pred_region
          %p244 = scmp.lt.s32.totalorder %s17, 1
          %s245 = scalar_select %p244, %s17, 1
          %s246 = smul.addr %s245, 8
          %s247 = smul.addr %s246, 8
          %s248 = scalar_lea.vmem %s0, %s247
        $region44: #{tpu_custom_call.1} parent=39 // pred_fallthru
          _
      $region40: #{tpu_custom_call.1} parent=5 // pred_fallthru
        _
      %p249 = scmp.le.s32.totalorder 1, %s17
      %p250 = scmp.lt.s32.totalorder %s17, 3
      %p251 = pnand %p249, %p250
      %p252 = pneg %p251
      // Predicated region
      $region45: #{tpu_custom_call.1} parent=5 // pred_check
        _
      $region46: #{tpu_custom_call.1} parent=5 // pred_check_branch
        %254 = sbr.rel (%p251) target = $region48
      $region47: #{tpu_custom_call.1} parent=5 // pred_region
        %s255 = ssub.s32 %s17, 1
        // Predicated region
        $region49: #{tpu_custom_call.1} parent=47 // pred_check
          %p256 = pneg %p148
        $region50: #{tpu_custom_call.1} parent=47 // pred_check_branch
          %258 = sbr.rel (%p256) target = $region52
        $region51: #{tpu_custom_call.1} parent=47 // pred_region
          %260 = dma.done [#allocation3], 512
        $region52: #{tpu_custom_call.1} parent=47 // pred_fallthru
          _
        %p261 = scmp.lt.s32.totalorder %s22, 1
        %s262 = scalar_select %p261, %s22, 1
        %s263 = smul.addr %s262, 8
        %s264 = smul.addr %s263, 8
        %s265 = scalar_lea.vmem %s0, %s264
        %p266 = pneg %p43
        %p267 = pneg %p40
        %p268 = pneg %p64
        %p269 = pneg %p61
        %p270 = pneg %p85
        %p271 = pneg %p82
        %p272 = pneg %p106
        %p273 = pneg %p103
        %p274 = pneg %p127
        %p275 = pneg %p124
        %p276 = pneg %p148
        %p277 = pneg %p145
        %p278 = pneg %p169
        %p279 = pneg %p166
        %p280 = pneg %p195
        %p281 = pneg %p192
        %s282 = sand.u32 %s182, 1
        %s283 = scalar_lea.sflag [#allocation4], %s282
        %s284 = sand.u32 %s182, 1
        %s285 = smul.addr %s284, 64
        %s286 = scalar_lea.vmem [#allocation5], %s285
        %p287 = scmp.lt.s32.totalorder %s22, 1
        %s288 = scalar_select %p287, %s22, 1
        %s289 = smul.addr %s288, 8
        %s290 = smul.addr %s289, 8
        %s291 = scalar_lea.vmem %s0, %s290
        %v292 = vld [vmem:[%s291] sm:$0xff]
        %v293 = vld [vmem:[%s291 + $0x8] sm:$0xff]
        %v294 = vld [vmem:[%s291 + $0x10] sm:$0xff]
        %v295 = vld [vmem:[%s291 + $0x18] sm:$0xff]
        %v296 = vld [vmem:[%s291 + $0x20] sm:$0xff]
        %v297 = vld [vmem:[%s291 + $0x28] sm:$0xff]
        %v298 = vld [vmem:[%s291 + $0x30] sm:$0xff]
        %v299 = vld [vmem:[%s291 + $0x38] sm:$0xff]
        %v300 = vadd.f32 %v292, %v293
        %301 = vadd.xlane.f32.xlu0 %v300
        %v302 = vpop.xlane.xlu0 %301
        %v303 = vadd.f32 %v294, %v295
        %304 = vadd.xlane.f32.xlu0 %v303
        %v305 = vpop.xlane.xlu0 %304
        %v306 = vadd.f32 %v296, %v297
        %307 = vadd.xlane.f32.xlu0 %v306
        %v308 = vpop.xlane.xlu0 %307
        %v309 = vadd.f32 %v298, %v299
        %310 = vadd.xlane.f32.xlu0 %v309
        %v311 = vpop.xlane.xlu0 %310
        %v312 = vmul.f32 %v302, 0.00390625
        %v313 = vmul.f32 %v305, 0.00390625
        %v314 = vmul.f32 %v308, 0.00390625
        %v315 = vmul.f32 %v311, 0.00390625
        %v316 = vmax.f32 %v292, %v293
        %317 = vmax.xlane.f32.xlu0 %v316
        %v318 = vpop.xlane.xlu0 %317
        %v319 = vmax.f32 %v294, %v295
        %320 = vmax.xlane.f32.xlu0 %v319
        %v321 = vpop.xlane.xlu0 %320
        %v322 = vmax.f32 %v296, %v297
        %323 = vmax.xlane.f32.xlu0 %v322
        %v324 = vpop.xlane.xlu0 %323
        %v325 = vmax.f32 %v298, %v299
        %326 = vmax.xlane.f32.xlu0 %v325
        %v327 = vpop.xlane.xlu0 %326
        %v332 = vlaneseq
        %v333 = vand.u32 %v332, 127
        %v334 = vperm.slane %v312, %v333
        %v335 = vadd.s32 %v333, 4294967288
        %v336 = vperm.slane %v313, %v335
        %vm337 = vcmask 130112
        %v338 = vsel %vm337, %v336, %v334
        %v339 = vadd.s32 %v333, 4294967280
        %v340 = vperm.slane %v314, %v339
        %vm341 = vcmask 195712
        %v342 = vsel %vm341, %v340, %v338
        %v343 = vadd.s32 %v333, 4294967272
        %v344 = vperm.slane %v315, %v343
        %vm345 = vcmask 261312
        %v346 = vsel %vm345, %v344, %v342
        %v352 = vperm.slane %v318, %v333
        %v353 = vperm.slane %v321, %v335
        %v354 = vsel %vm337, %v353, %v352
        %v355 = vperm.slane %v324, %v339
        %v356 = vsel %vm341, %v355, %v354
        %v357 = vperm.slane %v327, %v343
        %v358 = vsel %vm345, %v357, %v356
        %vm360 = vcmask 1040384
        %v361 = vsel %vm360, %v346, %v358
        %v362 = vld [vmem:[%s1] sm:$0xff]
        %v363 = vld [vmem:[%s1 + $0x8] sm:$0xff]
        %v364 = vld [vmem:[%s1 + $0x10] sm:$0xff]
        %v365 = vld [vmem:[%s1 + $0x18] sm:$0xff]
        %v366 = vld [vmem:[%s2] sm:$0x1]
        %v368 = vperm.slane %v366, 0
        %vm370 = vcmask 261120
        %v372 = vsel %vm370, %v361, 0
        %374 = vmatpush.msra.mxu0 0.0
        %375 = vmatpush.msra.mxu0 0.0
        %376 = vmatpush.msra.mxu0 0.0
        %377 = vmatpush.msra.mxu0 0.0
        %378 = vmatpush.msra.mxu0 0.0
        %379 = vmatpush.msra.mxu0 0.0
        %380 = vmatpush.msra.mxu0 0.0
        %381 = vmatpush.msra.mxu0 0.0
        %382 = vmatpush.msra.mxu0 0.0
        %383 = vmatpush.msra.mxu0 0.0
        %384 = vmatpush.msra.mxu0 0.0
        %385 = vmatpush.msra.mxu0 0.0
        %386 = vmatpush.msra.mxu0 %v365
        %387 = vmatpush.msra.mxu0 %v364
        %388 = vmatpush.msra.mxu0 %v363
        %389 = vmatpush.msra.mxu0 %v362
        %390 = vmatmul.f32.gmra.mxu0 %v372
        %v391 = vpop.f32.mrf.mxu0
        %v392 = vadd.f32 %v368, %v391
        %393 = vdwg.mxu0
        %v394 = vmax.f32 %v392, 0.0
        %v396 = vrot.slane %v394, 1
        %v398 = vadd.f32 %v394, %v396
        %v399 = vld [vmem:[%s3] sm:$0x3]
        %v400 = vld [vmem:[%s4] sm:$0x1]
        %vm401 = vcmask 15360
        %v403 = vsel %vm401, %v398, 0
        %vm405 = vcmask 1041408
        %v407 = vsel %vm405, %v399, 0
        %409 = vmatpush.msra.mxu0 0.0
        %410 = vmatpush.msra.mxu0 0.0
        %411 = vmatpush.msra.mxu0 0.0
        %412 = vmatpush.msra.mxu0 0.0
        %413 = vmatpush.msra.mxu0 0.0
        %414 = vmatpush.msra.mxu0 0.0
        %415 = vmatpush.msra.mxu0 0.0
        %416 = vmatpush.msra.mxu0 0.0
        %417 = vmatpush.msra.mxu0 0.0
        %418 = vmatpush.msra.mxu0 0.0
        %419 = vmatpush.msra.mxu0 0.0
        %420 = vmatpush.msra.mxu0 0.0
        %421 = vmatpush.msra.mxu0 0.0
        %422 = vmatpush.msra.mxu0 0.0
        %423 = vmatpush.msra.mxu0 0.0
        %424 = vmatpush.msra.mxu0 %v407
        %425 = vmatmul.f32.gmra.mxu0 %v403
        %v426 = vpop.f32.mrf.mxu0
        %v427 = vadd.f32 %v400, %v426
        %428 = vdwg.mxu0
        %v429 = vxor.u32 %v427, 2147483648
        %v430 = vmul.f32 %v429, 1.442695
        %v431 = vpow.pop %v430
        %v432 = vadd.f32 %v431, 1.0
        %v433 = vrcp.pop %v432
        %v434 = vmul.f32 %v432, %v433
        %v435 = vsub.f32 1.0, %v434
        %v436 = vmul.f32 %v433, %v435
        %v437 = vadd.f32 %v433, %v436
        %vm438 = vweird.f32 %v432
        %vm439 = vweird.f32 %v433
        %vm440 = vmor %vm438, %vm439
        %v441 = vsel %vm440, %v433, %v437
        %v442 = vand.u32 2147483647, %v432
        %vm443 = vcmp.eq.f32.partialorder %v442, 8.507059e+37
        %v444 = vand.u32 %v432, 2147483648
        %v445 = vor.u32 1.1754944e-38, %v444
        %v446 = vsel %vm443, %v445, %v441
        %v447 = vmul.f32 1.0, %v446
        %v448 = vperm.slane %v447, 0
        %v449 = vlaneseq
        %v450 = vshrl.u32 %v449, 7
        %452 = vset.pattern.permute.xlu0 %v450
        %453 = vperm.xlu0 %452, %v448
        %v454 = vpop.permute.xlu0 %453
        %v455 = vlaneseq
        %v456 = vshrl.u32 %v455, 7
        %v457 = vadd.s32 %v456, 8
        %458 = vset.pattern.permute.xlu0 %v457
        %459 = vperm.xlu0 %458, %v448
        %v460 = vpop.permute.xlu0 %459
        %v461 = vlaneseq
        %v462 = vshrl.u32 %v461, 7
        %v463 = vadd.s32 %v462, 16
        %464 = vset.pattern.permute.xlu0 %v463
        %465 = vperm.xlu0 %464, %v448
        %v466 = vpop.permute.xlu0 %465
        %v467 = vlaneseq
        %v468 = vshrl.u32 %v467, 7
        %v469 = vadd.s32 %v468, 24
        %470 = vset.pattern.permute.xlu0 %v469
        %471 = vperm.xlu0 %470, %v448
        %v472 = vpop.permute.xlu0 %471
        %v473 = vmul.f32 %v292, %v454
        %v474 = vmul.f32 %v293, %v454
        %v475 = vmul.f32 %v294, %v460
        %v476 = vmul.f32 %v295, %v460
        %v477 = vmul.f32 %v296, %v466
        %v478 = vmul.f32 %v297, %v466
        %v479 = vmul.f32 %v298, %v472
        %v480 = vmul.f32 %v299, %v472
        %v481 = vmax.f32 %v473, %v477
        %v482 = vmax.f32 %v475, %v479
        %v483 = vmax.f32 %v481, %v482
        %v484 = vrot.slane %v483, 4
        %v485 = vmax.f32 %v483, %v484
        %v486 = vrot.slane %v485, 2
        %v487 = vmax.f32 %v485, %v486
        %v488 = vrot.slane %v487, 1
        %v489 = vmax.f32 %v487, %v488
        %v490 = vmax.f32 %v474, %v478
        %v491 = vmax.f32 %v476, %v480
        %v492 = vmax.f32 %v490, %v491
        %v493 = vrot.slane %v492, 4
        %v494 = vmax.f32 %v492, %v493
        %v495 = vrot.slane %v494, 2
        %v496 = vmax.f32 %v494, %v495
        %v497 = vrot.slane %v496, 1
        %v498 = vmax.f32 %v496, %v497
        %v499 = vadd.f32 %v473, %v475
        %v500 = vadd.f32 %v499, %v477
        %v501 = vadd.f32 %v500, %v479
        %v502 = vrot.slane %v501, 4
        %v503 = vadd.f32 %v501, %v502
        %v504 = vrot.slane %v503, 2
        %v505 = vadd.f32 %v503, %v504
        %v506 = vrot.slane %v505, 1
        %v507 = vadd.f32 %v505, %v506
        %v508 = vadd.f32 %v474, %v476
        %v509 = vadd.f32 %v508, %v478
        %v510 = vadd.f32 %v509, %v480
        %v511 = vrot.slane %v510, 4
        %v512 = vadd.f32 %v510, %v511
        %v513 = vrot.slane %v512, 2
        %v514 = vadd.f32 %v512, %v513
        %v515 = vrot.slane %v514, 1
        %v516 = vadd.f32 %v514, %v515
        %v517 = vmul.f32 %v507, 0.03125
        %v518 = vmul.f32 %v516, 0.03125
        %v519 = vsel %vm360, %v489, %v517
        %v520 = vsel %vm360, %v498, %v518
        %521 = vrot.lane.b32.xlu0 0.0, 51
        %v522 = vpop.permute.xlu0 %521
        %523 = vrot.lane.b32.xlu0 %v519, 51
        %v524 = vpop.permute.xlu0 %523
        %525 = vrot.lane.b32.xlu0 %v520, 51
        %v526 = vpop.permute.xlu0 %525
        %vm527 = vcmp.lt.s32.totalorder %v333, 51
        %v528 = vsel %vm527, %v524, %v526
        %v529 = vsel %vm527, %v522, %v524
        %v530 = vld [vmem:[%s6] sm:$0x3]
        %532 = vset.pattern.permute.xlu0 0
        %533 = vperm.xlu0 %532, %v530
        %v534 = vpop.permute.xlu0 %533
        %v536 = vmul.f32 %v534, %v529
        %v537 = vmul.f32 %v534, %v528
        %v538 = vadd.f32 %v536, 0.0
        %v539 = vadd.f32 %v537, 0.0
        %540 = vrot.lane.b32.xlu0 0.0, 35
        %v541 = vpop.permute.xlu0 %540
        %542 = vrot.lane.b32.xlu0 %v519, 35
        %v543 = vpop.permute.xlu0 %542
        %544 = vrot.lane.b32.xlu0 %v520, 35
        %v545 = vpop.permute.xlu0 %544
        %vm546 = vcmp.lt.s32.totalorder %v333, 35
        %v547 = vsel %vm546, %v543, %v545
        %v548 = vsel %vm546, %v541, %v543
        %s549 = scalar_lea.vmem %s6, 14
        %v550 = vld [vmem:[%s549] sm:$0x3]
        %552 = vset.pattern.permute.xlu0 0
        %553 = vperm.xlu0 %552, %v550
        %v554 = vpop.permute.xlu0 %553
        %v556 = vmul.f32 %v554, %v548
        %v557 = vmul.f32 %v554, %v547
        %v558 = vadd.f32 %v538, %v556
        %v559 = vadd.f32 %v539, %v557
        %560 = vrot.lane.b32.xlu0 0.0, 19
        %v561 = vpop.permute.xlu0 %560
        %562 = vrot.lane.b32.xlu0 %v519, 19
        %v563 = vpop.permute.xlu0 %562
        %564 = vrot.lane.b32.xlu0 %v520, 19
        %v565 = vpop.permute.xlu0 %564
        %vm566 = vcmp.lt.s32.totalorder %v333, 19
        %v567 = vsel %vm566, %v563, %v565
        %v568 = vsel %vm566, %v561, %v563
        %s569 = scalar_lea.vmem %s6, 28
        %v570 = vld [vmem:[%s569] sm:$0x3]
        %572 = vset.pattern.permute.xlu0 0
        %573 = vperm.xlu0 %572, %v570
        %v574 = vpop.permute.xlu0 %573
        %v576 = vmul.f32 %v574, %v568
        %v577 = vmul.f32 %v574, %v567
        %v578 = vadd.f32 %v558, %v576
        %v579 = vadd.f32 %v559, %v577
        %580 = vrot.lane.b32.xlu0 0.0, 3
        %v581 = vpop.permute.xlu0 %580
        %582 = vrot.lane.b32.xlu0 %v519, 3
        %v583 = vpop.permute.xlu0 %582
        %584 = vrot.lane.b32.xlu0 %v520, 3
        %v585 = vpop.permute.xlu0 %584
        %vm586 = vcmp.lt.s32.totalorder %v333, 3
        %v587 = vsel %vm586, %v583, %v585
        %v588 = vsel %vm586, %v581, %v583
        %s589 = scalar_lea.vmem %s6, 42
        %v590 = vld [vmem:[%s589] sm:$0x3]
        %592 = vset.pattern.permute.xlu0 0
        %593 = vperm.xlu0 %592, %v590
        %v594 = vpop.permute.xlu0 %593
        %v596 = vmul.f32 %v594, %v588
        %v597 = vmul.f32 %v594, %v587
        %v598 = vadd.f32 %v578, %v596
        %v599 = vadd.f32 %v579, %v597
        %600 = vrot.lane.b32.xlu0 %v519, 115
        %v601 = vpop.permute.xlu0 %600
        %602 = vrot.lane.b32.xlu0 %v520, 115
        %v603 = vpop.permute.xlu0 %602
        %604 = vrot.lane.b32.xlu0 0.0, 115
        %v605 = vpop.permute.xlu0 %604
        %vm606 = vcmp.lt.s32.totalorder %v333, 115
        %v607 = vsel %vm606, %v603, %v605
        %v608 = vsel %vm606, %v601, %v603
        %s609 = scalar_lea.vmem %s6, 56
        %v610 = vld [vmem:[%s609] sm:$0x3]
        %612 = vset.pattern.permute.xlu0 0
        %613 = vperm.xlu0 %612, %v610
        %v614 = vpop.permute.xlu0 %613
        %v616 = vmul.f32 %v614, %v608
        %v617 = vmul.f32 %v614, %v607
        %v618 = vadd.f32 %v598, %v616
        %v619 = vadd.f32 %v599, %v617
        %620 = vrot.lane.b32.xlu0 %v519, 99
        %v621 = vpop.permute.xlu0 %620
        %622 = vrot.lane.b32.xlu0 %v520, 99
        %v623 = vpop.permute.xlu0 %622
        %624 = vrot.lane.b32.xlu0 0.0, 99
        %v625 = vpop.permute.xlu0 %624
        %vm626 = vcmp.lt.s32.totalorder %v333, 99
        %v627 = vsel %vm626, %v623, %v625
        %v628 = vsel %vm626, %v621, %v623
        %s629 = scalar_lea.vmem %s6, 70
        %v630 = vld [vmem:[%s629] sm:$0x3]
        %632 = vset.pattern.permute.xlu0 0
        %633 = vperm.xlu0 %632, %v630
        %v634 = vpop.permute.xlu0 %633
        %v636 = vmul.f32 %v634, %v628
        %v637 = vmul.f32 %v634, %v627
        %v638 = vadd.f32 %v618, %v636
        %v639 = vadd.f32 %v619, %v637
        %640 = vrot.lane.b32.xlu0 %v519, 83
        %v641 = vpop.permute.xlu0 %640
        %642 = vrot.lane.b32.xlu0 %v520, 83
        %v643 = vpop.permute.xlu0 %642
        %644 = vrot.lane.b32.xlu0 0.0, 83
        %v645 = vpop.permute.xlu0 %644
        %vm646 = vcmp.lt.s32.totalorder %v333, 83
        %v647 = vsel %vm646, %v643, %v645
        %v648 = vsel %vm646, %v641, %v643
        %s649 = scalar_lea.vmem %s6, 84
        %v650 = vld [vmem:[%s649] sm:$0x3]
        %652 = vset.pattern.permute.xlu0 0
        %653 = vperm.xlu0 %652, %v650
        %v654 = vpop.permute.xlu0 %653
        %v656 = vmul.f32 %v654, %v648
        %v657 = vmul.f32 %v654, %v647
        %v658 = vadd.f32 %v638, %v656
        %v659 = vadd.f32 %v639, %v657
        %v660 = vld [vmem:[#allocation2] ss:$8 sm:$0xf]
        %v662 = vperm.slane %v660, 1
        %v663 = vperm.slane %v660, 2
        %v666 = vmul.f32 %v658, %v662
        %v667 = vmul.f32 %v659, %v663
        %v668 = vadd.f32 %v666, 0.0
        %v669 = vadd.f32 %v667, 0.0
        %670 = vrot.lane.b32.xlu0 0.0, 50
        %v671 = vpop.permute.xlu0 %670
        %672 = vrot.lane.b32.xlu0 %v519, 50
        %v673 = vpop.permute.xlu0 %672
        %674 = vrot.lane.b32.xlu0 %v520, 50
        %v675 = vpop.permute.xlu0 %674
        %vm676 = vcmp.lt.s32.totalorder %v333, 50
        %v677 = vsel %vm676, %v673, %v675
        %v678 = vsel %vm676, %v671, %v673
        %s679 = scalar_lea.vmem %s6, 2
        %v680 = vld [vmem:[%s679] sm:$0x3]
        %682 = vset.pattern.permute.xlu0 0
        %683 = vperm.xlu0 %682, %v680
        %v684 = vpop.permute.xlu0 %683
        %v686 = vmul.f32 %v684, %v678
        %v687 = vmul.f32 %v684, %v677
        %v688 = vadd.f32 %v686, 0.0
        %v689 = vadd.f32 %v687, 0.0
        %690 = vrot.lane.b32.xlu0 0.0, 34
        %v691 = vpop.permute.xlu0 %690
        %692 = vrot.lane.b32.xlu0 %v519, 34
        %v693 = vpop.permute.xlu0 %692
        %694 = vrot.lane.b32.xlu0 %v520, 34
        %v695 = vpop.permute.xlu0 %694
        %vm696 = vcmp.lt.s32.totalorder %v333, 34
        %v697 = vsel %vm696, %v693, %v695
        %v698 = vsel %vm696, %v691, %v693
        %s699 = scalar_lea.vmem %s6, 16
        %v700 = vld [vmem:[%s699] sm:$0x3]
        %702 = vset.pattern.permute.xlu0 0
        %703 = vperm.xlu0 %702, %v700
        %v704 = vpop.permute.xlu0 %703
        %v706 = vmul.f32 %v704, %v698
        %v707 = vmul.f32 %v704, %v697
        %v708 = vadd.f32 %v688, %v706
        %v709 = vadd.f32 %v689, %v707
        %710 = vrot.lane.b32.xlu0 0.0, 18
        %v711 = vpop.permute.xlu0 %710
        %712 = vrot.lane.b32.xlu0 %v519, 18
        %v713 = vpop.permute.xlu0 %712
        %714 = vrot.lane.b32.xlu0 %v520, 18
        %v715 = vpop.permute.xlu0 %714
        %vm716 = vcmp.lt.s32.totalorder %v333, 18
        %v717 = vsel %vm716, %v713, %v715
        %v718 = vsel %vm716, %v711, %v713
        %s719 = scalar_lea.vmem %s6, 30
        %v720 = vld [vmem:[%s719] sm:$0x3]
        %722 = vset.pattern.permute.xlu0 0
        %723 = vperm.xlu0 %722, %v720
        %v724 = vpop.permute.xlu0 %723
        %v726 = vmul.f32 %v724, %v718
        %v727 = vmul.f32 %v724, %v717
        %v728 = vadd.f32 %v708, %v726
        %v729 = vadd.f32 %v709, %v727
        %730 = vrot.lane.b32.xlu0 0.0, 2
        %v731 = vpop.permute.xlu0 %730
        %732 = vrot.lane.b32.xlu0 %v519, 2
        %v733 = vpop.permute.xlu0 %732
        %734 = vrot.lane.b32.xlu0 %v520, 2
        %v735 = vpop.permute.xlu0 %734
        %vm736 = vcmp.lt.s32.totalorder %v333, 2
        %v737 = vsel %vm736, %v733, %v735
        %v738 = vsel %vm736, %v731, %v733
        %s739 = scalar_lea.vmem %s6, 44
        %v740 = vld [vmem:[%s739] sm:$0x3]
        %742 = vset.pattern.permute.xlu0 0
        %743 = vperm.xlu0 %742, %v740
        %v744 = vpop.permute.xlu0 %743
        %v746 = vmul.f32 %v744, %v738
        %v747 = vmul.f32 %v744, %v737
        %v748 = vadd.f32 %v728, %v746
        %v749 = vadd.f32 %v729, %v747
        %750 = vrot.lane.b32.xlu0 %v519, 114
        %v751 = vpop.permute.xlu0 %750
        %752 = vrot.lane.b32.xlu0 %v520, 114
        %v753 = vpop.permute.xlu0 %752
        %754 = vrot.lane.b32.xlu0 0.0, 114
        %v755 = vpop.permute.xlu0 %754
        %vm756 = vcmp.lt.s32.totalorder %v333, 114
        %v757 = vsel %vm756, %v753, %v755
        %v758 = vsel %vm756, %v751, %v753
        %s759 = scalar_lea.vmem %s6, 58
        %v760 = vld [vmem:[%s759] sm:$0x3]
        %762 = vset.pattern.permute.xlu0 0
        %763 = vperm.xlu0 %762, %v760
        %v764 = vpop.permute.xlu0 %763
        %v766 = vmul.f32 %v764, %v758
        %v767 = vmul.f32 %v764, %v757
        %v768 = vadd.f32 %v748, %v766
        %v769 = vadd.f32 %v749, %v767
        %770 = vrot.lane.b32.xlu0 %v519, 98
        %v771 = vpop.permute.xlu0 %770
        %772 = vrot.lane.b32.xlu0 %v520, 98
        %v773 = vpop.permute.xlu0 %772
        %774 = vrot.lane.b32.xlu0 0.0, 98
        %v775 = vpop.permute.xlu0 %774
        %vm776 = vcmp.lt.s32.totalorder %v333, 98
        %v777 = vsel %vm776, %v773, %v775
        %v778 = vsel %vm776, %v771, %v773
        %s779 = scalar_lea.vmem %s6, 72
        %v780 = vld [vmem:[%s779] sm:$0x3]
        %782 = vset.pattern.permute.xlu0 0
        %783 = vperm.xlu0 %782, %v780
        %v784 = vpop.permute.xlu0 %783
        %v786 = vmul.f32 %v784, %v778
        %v787 = vmul.f32 %v784, %v777
        %v788 = vadd.f32 %v768, %v786
        %v789 = vadd.f32 %v769, %v787
        %790 = vrot.lane.b32.xlu0 %v519, 82
        %v791 = vpop.permute.xlu0 %790
        %792 = vrot.lane.b32.xlu0 %v520, 82
        %v793 = vpop.permute.xlu0 %792
        %794 = vrot.lane.b32.xlu0 0.0, 82
        %v795 = vpop.permute.xlu0 %794
        %vm796 = vcmp.lt.s32.totalorder %v333, 82
        %v797 = vsel %vm796, %v793, %v795
        %v798 = vsel %vm796, %v791, %v793
        %s799 = scalar_lea.vmem %s6, 86
        %v800 = vld [vmem:[%s799] sm:$0x3]
        %802 = vset.pattern.permute.xlu0 0
        %803 = vperm.xlu0 %802, %v800
        %v804 = vpop.permute.xlu0 %803
        %v806 = vmul.f32 %v804, %v798
        %v807 = vmul.f32 %v804, %v797
        %v808 = vadd.f32 %v788, %v806
        %v809 = vadd.f32 %v789, %v807
        %s810 = scalar_lea.vmem [#allocation2], 1
        %v811 = vld [vmem:[%s810] ss:$8 sm:$0xf]
        %v813 = vperm.slane %v811, 1
        %v814 = vperm.slane %v811, 2
        %v817 = vmul.f32 %v808, %v813
        %v818 = vmul.f32 %v809, %v814
        %v819 = vadd.f32 %v668, %v817
        %v820 = vadd.f32 %v669, %v818
        %821 = vrot.lane.b32.xlu0 0.0, 49
        %v822 = vpop.permute.xlu0 %821
        %823 = vrot.lane.b32.xlu0 %v519, 49
        %v824 = vpop.permute.xlu0 %823
        %825 = vrot.lane.b32.xlu0 %v520, 49
        %v826 = vpop.permute.xlu0 %825
        %vm827 = vcmp.lt.s32.totalorder %v333, 49
        %v828 = vsel %vm827, %v824, %v826
        %v829 = vsel %vm827, %v822, %v824
        %s830 = scalar_lea.vmem %s6, 4
        %v831 = vld [vmem:[%s830] sm:$0x3]
        %833 = vset.pattern.permute.xlu0 0
        %834 = vperm.xlu0 %833, %v831
        %v835 = vpop.permute.xlu0 %834
        %v837 = vmul.f32 %v835, %v829
        %v838 = vmul.f32 %v835, %v828
        %v839 = vadd.f32 %v837, 0.0
        %v840 = vadd.f32 %v838, 0.0
        %841 = vrot.lane.b32.xlu0 0.0, 33
        %v842 = vpop.permute.xlu0 %841
        %843 = vrot.lane.b32.xlu0 %v519, 33
        %v844 = vpop.permute.xlu0 %843
        %845 = vrot.lane.b32.xlu0 %v520, 33
        %v846 = vpop.permute.xlu0 %845
        %vm847 = vcmp.lt.s32.totalorder %v333, 33
        %v848 = vsel %vm847, %v844, %v846
        %v849 = vsel %vm847, %v842, %v844
        %s850 = scalar_lea.vmem %s6, 18
        %v851 = vld [vmem:[%s850] sm:$0x3]
        %853 = vset.pattern.permute.xlu0 0
        %854 = vperm.xlu0 %853, %v851
        %v855 = vpop.permute.xlu0 %854
        %v857 = vmul.f32 %v855, %v849
        %v858 = vmul.f32 %v855, %v848
        %v859 = vadd.f32 %v839, %v857
        %v860 = vadd.f32 %v840, %v858
        %861 = vrot.lane.b32.xlu0 0.0, 17
        %v862 = vpop.permute.xlu0 %861
        %863 = vrot.lane.b32.xlu0 %v519, 17
        %v864 = vpop.permute.xlu0 %863
        %865 = vrot.lane.b32.xlu0 %v520, 17
        %v866 = vpop.permute.xlu0 %865
        %vm867 = vcmp.lt.s32.totalorder %v333, 17
        %v868 = vsel %vm867, %v864, %v866
        %v869 = vsel %vm867, %v862, %v864
        %s870 = scalar_lea.vmem %s6, 32
        %v871 = vld [vmem:[%s870] sm:$0x3]
        %873 = vset.pattern.permute.xlu0 0
        %874 = vperm.xlu0 %873, %v871
        %v875 = vpop.permute.xlu0 %874
        %v877 = vmul.f32 %v875, %v869
        %v878 = vmul.f32 %v875, %v868
        %v879 = vadd.f32 %v859, %v877
        %v880 = vadd.f32 %v860, %v878
        %881 = vrot.lane.b32.xlu0 0.0, 1
        %v882 = vpop.permute.xlu0 %881
        %883 = vrot.lane.b32.xlu0 %v519, 1
        %v884 = vpop.permute.xlu0 %883
        %885 = vrot.lane.b32.xlu0 %v520, 1
        %v886 = vpop.permute.xlu0 %885
        %vm887 = vcmp.lt.s32.totalorder %v333, 1
        %v888 = vsel %vm887, %v884, %v886
        %v889 = vsel %vm887, %v882, %v884
        %s890 = scalar_lea.vmem %s6, 46
        %v891 = vld [vmem:[%s890] sm:$0x3]
        %893 = vset.pattern.permute.xlu0 0
        %894 = vperm.xlu0 %893, %v891
        %v895 = vpop.permute.xlu0 %894
        %v897 = vmul.f32 %v895, %v889
        %v898 = vmul.f32 %v895, %v888
        %v899 = vadd.f32 %v879, %v897
        %v900 = vadd.f32 %v880, %v898
        %901 = vrot.lane.b32.xlu0 %v519, 113
        %v902 = vpop.permute.xlu0 %901
        %903 = vrot.lane.b32.xlu0 %v520, 113
        %v904 = vpop.permute.xlu0 %903
        %905 = vrot.lane.b32.xlu0 0.0, 113
        %v906 = vpop.permute.xlu0 %905
        %vm907 = vcmp.lt.s32.totalorder %v333, 113
        %v908 = vsel %vm907, %v904, %v906
        %v909 = vsel %vm907, %v902, %v904
        %s910 = scalar_lea.vmem %s6, 60
        %v911 = vld [vmem:[%s910] sm:$0x3]
        %913 = vset.pattern.permute.xlu0 0
        %914 = vperm.xlu0 %913, %v911
        %v915 = vpop.permute.xlu0 %914
        %v917 = vmul.f32 %v915, %v909
        %v918 = vmul.f32 %v915, %v908
        %v919 = vadd.f32 %v899, %v917
        %v920 = vadd.f32 %v900, %v918
        %921 = vrot.lane.b32.xlu0 %v519, 97
        %v922 = vpop.permute.xlu0 %921
        %923 = vrot.lane.b32.xlu0 %v520, 97
        %v924 = vpop.permute.xlu0 %923
        %925 = vrot.lane.b32.xlu0 0.0, 97
        %v926 = vpop.permute.xlu0 %925
        %vm927 = vcmp.lt.s32.totalorder %v333, 97
        %v928 = vsel %vm927, %v924, %v926
        %v929 = vsel %vm927, %v922, %v924
        %s930 = scalar_lea.vmem %s6, 74
        %v931 = vld [vmem:[%s930] sm:$0x3]
        %933 = vset.pattern.permute.xlu0 0
        %934 = vperm.xlu0 %933, %v931
        %v935 = vpop.permute.xlu0 %934
        %v937 = vmul.f32 %v935, %v929
        %v938 = vmul.f32 %v935, %v928
        %v939 = vadd.f32 %v919, %v937
        %v940 = vadd.f32 %v920, %v938
        %941 = vrot.lane.b32.xlu0 %v519, 81
        %v942 = vpop.permute.xlu0 %941
        %943 = vrot.lane.b32.xlu0 %v520, 81
        %v944 = vpop.permute.xlu0 %943
        %945 = vrot.lane.b32.xlu0 0.0, 81
        %v946 = vpop.permute.xlu0 %945
        %vm947 = vcmp.lt.s32.totalorder %v333, 81
        %v948 = vsel %vm947, %v944, %v946
        %v949 = vsel %vm947, %v942, %v944
        %s950 = scalar_lea.vmem %s6, 88
        %v951 = vld [vmem:[%s950] sm:$0x3]
        %953 = vset.pattern.permute.xlu0 0
        %954 = vperm.xlu0 %953, %v951
        %v955 = vpop.permute.xlu0 %954
        %v957 = vmul.f32 %v955, %v949
        %v958 = vmul.f32 %v955, %v948
        %v959 = vadd.f32 %v939, %v957
        %v960 = vadd.f32 %v940, %v958
        %s961 = scalar_lea.vmem [#allocation2], 2
        %v962 = vld [vmem:[%s961] ss:$8 sm:$0xf]
        %v964 = vperm.slane %v962, 1
        %v965 = vperm.slane %v962, 2
        %v968 = vmul.f32 %v959, %v964
        %v969 = vmul.f32 %v960, %v965
        %v970 = vadd.f32 %v819, %v968
        %v971 = vadd.f32 %v820, %v969
        %972 = vrot.lane.b32.xlu0 0.0, 48
        %v973 = vpop.permute.xlu0 %972
        %974 = vrot.lane.b32.xlu0 %v519, 48
        %v975 = vpop.permute.xlu0 %974
        %976 = vrot.lane.b32.xlu0 %v520, 48
        %v977 = vpop.permute.xlu0 %976
        %vm978 = vcmp.lt.s32.totalorder %v333, 48
        %v979 = vsel %vm978, %v975, %v977
        %v980 = vsel %vm978, %v973, %v975
        %s981 = scalar_lea.vmem %s6, 6
        %v982 = vld [vmem:[%s981] sm:$0x3]
        %984 = vset.pattern.permute.xlu0 0
        %985 = vperm.xlu0 %984, %v982
        %v986 = vpop.permute.xlu0 %985
        %v988 = vmul.f32 %v986, %v980
        %v989 = vmul.f32 %v986, %v979
        %v990 = vadd.f32 %v988, 0.0
        %v991 = vadd.f32 %v989, 0.0
        %992 = vrot.lane.b32.xlu0 0.0, 32
        %v993 = vpop.permute.xlu0 %992
        %994 = vrot.lane.b32.xlu0 %v519, 32
        %v995 = vpop.permute.xlu0 %994
        %996 = vrot.lane.b32.xlu0 %v520, 32
        %v997 = vpop.permute.xlu0 %996
        %vm998 = vcmp.lt.s32.totalorder %v333, 32
        %v999 = vsel %vm998, %v995, %v997
        %v1000 = vsel %vm998, %v993, %v995
        %s1001 = scalar_lea.vmem %s6, 20
        %v1002 = vld [vmem:[%s1001] sm:$0x3]
        %1004 = vset.pattern.permute.xlu0 0
        %1005 = vperm.xlu0 %1004, %v1002
        %v1006 = vpop.permute.xlu0 %1005
        %v1008 = vmul.f32 %v1006, %v1000
        %v1009 = vmul.f32 %v1006, %v999
        %v1010 = vadd.f32 %v990, %v1008
        %v1011 = vadd.f32 %v991, %v1009
        %1012 = vrot.lane.b32.xlu0 0.0, 16
        %v1013 = vpop.permute.xlu0 %1012
        %1014 = vrot.lane.b32.xlu0 %v519, 16
        %v1015 = vpop.permute.xlu0 %1014
        %1016 = vrot.lane.b32.xlu0 %v520, 16
        %v1017 = vpop.permute.xlu0 %1016
        %vm1018 = vcmp.lt.s32.totalorder %v333, 16
        %v1019 = vsel %vm1018, %v1015, %v1017
        %v1020 = vsel %vm1018, %v1013, %v1015
        %s1021 = scalar_lea.vmem %s6, 34
        %v1022 = vld [vmem:[%s1021] sm:$0x3]
        %1024 = vset.pattern.permute.xlu0 0
        %1025 = vperm.xlu0 %1024, %v1022
        %v1026 = vpop.permute.xlu0 %1025
        %v1028 = vmul.f32 %v1026, %v1020
        %v1029 = vmul.f32 %v1026, %v1019
        %v1030 = vadd.f32 %v1010, %v1028
        %v1031 = vadd.f32 %v1011, %v1029
        %s1032 = scalar_lea.vmem %s6, 48
        %v1033 = vld [vmem:[%s1032] sm:$0x3]
        %1035 = vset.pattern.permute.xlu0 0
        %1036 = vperm.xlu0 %1035, %v1033
        %v1037 = vpop.permute.xlu0 %1036
        %v1039 = vmul.f32 %v1037, %v519
        %v1040 = vmul.f32 %v1037, %v520
        %v1041 = vadd.f32 %v1030, %v1039
        %v1042 = vadd.f32 %v1031, %v1040
        %1043 = vrot.lane.b32.xlu0 %v519, 112
        %v1044 = vpop.permute.xlu0 %1043
        %1045 = vrot.lane.b32.xlu0 %v520, 112
        %v1046 = vpop.permute.xlu0 %1045
        %1047 = vrot.lane.b32.xlu0 0.0, 112
        %v1048 = vpop.permute.xlu0 %1047
        %vm1049 = vcmp.lt.s32.totalorder %v333, 112
        %v1050 = vsel %vm1049, %v1046, %v1048
        %v1051 = vsel %vm1049, %v1044, %v1046
        %s1052 = scalar_lea.vmem %s6, 62
        %v1053 = vld [vmem:[%s1052] sm:$0x3]
        %1055 = vset.pattern.permute.xlu0 0
        %1056 = vperm.xlu0 %1055, %v1053
        %v1057 = vpop.permute.xlu0 %1056
        %v1059 = vmul.f32 %v1057, %v1051
        %v1060 = vmul.f32 %v1057, %v1050
        %v1061 = vadd.f32 %v1041, %v1059
        %v1062 = vadd.f32 %v1042, %v1060
        %1063 = vrot.lane.b32.xlu0 %v519, 96
        %v1064 = vpop.permute.xlu0 %1063
        %1065 = vrot.lane.b32.xlu0 %v520, 96
        %v1066 = vpop.permute.xlu0 %1065
        %1067 = vrot.lane.b32.xlu0 0.0, 96
        %v1068 = vpop.permute.xlu0 %1067
        %vm1069 = vcmp.lt.s32.totalorder %v333, 96
        %v1070 = vsel %vm1069, %v1066, %v1068
        %v1071 = vsel %vm1069, %v1064, %v1066
        %s1072 = scalar_lea.vmem %s6, 76
        %v1073 = vld [vmem:[%s1072] sm:$0x3]
        %1075 = vset.pattern.permute.xlu0 0
        %1076 = vperm.xlu0 %1075, %v1073
        %v1077 = vpop.permute.xlu0 %1076
        %v1079 = vmul.f32 %v1077, %v1071
        %v1080 = vmul.f32 %v1077, %v1070
        %v1081 = vadd.f32 %v1061, %v1079
        %v1082 = vadd.f32 %v1062, %v1080
        %1083 = vrot.lane.b32.xlu0 %v519, 80
        %v1084 = vpop.permute.xlu0 %1083
        %1085 = vrot.lane.b32.xlu0 %v520, 80
        %v1086 = vpop.permute.xlu0 %1085
        %1087 = vrot.lane.b32.xlu0 0.0, 80
        %v1088 = vpop.permute.xlu0 %1087
        %vm1089 = vcmp.lt.s32.totalorder %v333, 80
        %v1090 = vsel %vm1089, %v1086, %v1088
        %v1091 = vsel %vm1089, %v1084, %v1086
        %s1092 = scalar_lea.vmem %s6, 90
        %v1093 = vld [vmem:[%s1092] sm:$0x3]
        %1095 = vset.pattern.permute.xlu0 0
        %1096 = vperm.xlu0 %1095, %v1093
        %v1097 = vpop.permute.xlu0 %1096
        %v1099 = vmul.f32 %v1097, %v1091
        %v1100 = vmul.f32 %v1097, %v1090
        %v1101 = vadd.f32 %v1081, %v1099
        %v1102 = vadd.f32 %v1082, %v1100
        %s1103 = scalar_lea.vmem [#allocation2], 3
        %v1104 = vld [vmem:[%s1103] ss:$8 sm:$0xf]
        %v1106 = vperm.slane %v1104, 1
        %v1107 = vperm.slane %v1104, 2
        %v1110 = vmul.f32 %v1101, %v1106
        %v1111 = vmul.f32 %v1102, %v1107
        %v1112 = vadd.f32 %v970, %v1110
        %v1113 = vadd.f32 %v971, %v1111
        %1114 = vrot.lane.b32.xlu0 0.0, 47
        %v1115 = vpop.permute.xlu0 %1114
        %1116 = vrot.lane.b32.xlu0 %v519, 47
        %v1117 = vpop.permute.xlu0 %1116
        %1118 = vrot.lane.b32.xlu0 %v520, 47
        %v1119 = vpop.permute.xlu0 %1118
        %vm1120 = vcmp.lt.s32.totalorder %v333, 47
        %v1121 = vsel %vm1120, %v1117, %v1119
        %v1122 = vsel %vm1120, %v1115, %v1117
        %s1123 = scalar_lea.vmem %s6, 8
        %v1124 = vld [vmem:[%s1123] sm:$0x3]
        %1126 = vset.pattern.permute.xlu0 0
        %1127 = vperm.xlu0 %1126, %v1124
        %v1128 = vpop.permute.xlu0 %1127
        %v1130 = vmul.f32 %v1128, %v1122
        %v1131 = vmul.f32 %v1128, %v1121
        %v1132 = vadd.f32 %v1130, 0.0
        %v1133 = vadd.f32 %v1131, 0.0
        %1134 = vrot.lane.b32.xlu0 0.0, 31
        %v1135 = vpop.permute.xlu0 %1134
        %1136 = vrot.lane.b32.xlu0 %v519, 31
        %v1137 = vpop.permute.xlu0 %1136
        %1138 = vrot.lane.b32.xlu0 %v520, 31
        %v1139 = vpop.permute.xlu0 %1138
        %vm1140 = vcmp.lt.s32.totalorder %v333, 31
        %v1141 = vsel %vm1140, %v1137, %v1139
        %v1142 = vsel %vm1140, %v1135, %v1137
        %s1143 = scalar_lea.vmem %s6, 22
        %v1144 = vld [vmem:[%s1143] sm:$0x3]
        %1146 = vset.pattern.permute.xlu0 0
        %1147 = vperm.xlu0 %1146, %v1144
        %v1148 = vpop.permute.xlu0 %1147
        %v1150 = vmul.f32 %v1148, %v1142
        %v1151 = vmul.f32 %v1148, %v1141
        %v1152 = vadd.f32 %v1132, %v1150
        %v1153 = vadd.f32 %v1133, %v1151
        %1154 = vrot.lane.b32.xlu0 0.0, 15
        %v1155 = vpop.permute.xlu0 %1154
        %1156 = vrot.lane.b32.xlu0 %v519, 15
        %v1157 = vpop.permute.xlu0 %1156
        %1158 = vrot.lane.b32.xlu0 %v520, 15
        %v1159 = vpop.permute.xlu0 %1158
        %vm1160 = vcmp.lt.s32.totalorder %v333, 15
        %v1161 = vsel %vm1160, %v1157, %v1159
        %v1162 = vsel %vm1160, %v1155, %v1157
        %s1163 = scalar_lea.vmem %s6, 36
        %v1164 = vld [vmem:[%s1163] sm:$0x3]
        %1166 = vset.pattern.permute.xlu0 0
        %1167 = vperm.xlu0 %1166, %v1164
        %v1168 = vpop.permute.xlu0 %1167
        %v1170 = vmul.f32 %v1168, %v1162
        %v1171 = vmul.f32 %v1168, %v1161
        %v1172 = vadd.f32 %v1152, %v1170
        %v1173 = vadd.f32 %v1153, %v1171
        %1174 = vrot.lane.b32.xlu0 %v519, 127
        %v1175 = vpop.permute.xlu0 %1174
        %1176 = vrot.lane.b32.xlu0 %v520, 127
        %v1177 = vpop.permute.xlu0 %1176
        %1178 = vrot.lane.b32.xlu0 0.0, 127
        %v1179 = vpop.permute.xlu0 %1178
        %vm1180 = vcmp.lt.s32.totalorder %v333, 127
        %v1181 = vsel %vm1180, %v1177, %v1179
        %v1182 = vsel %vm1180, %v1175, %v1177
        %s1183 = scalar_lea.vmem %s6, 50
        %v1184 = vld [vmem:[%s1183] sm:$0x3]
        %1186 = vset.pattern.permute.xlu0 0
        %1187 = vperm.xlu0 %1186, %v1184
        %v1188 = vpop.permute.xlu0 %1187
        %v1190 = vmul.f32 %v1188, %v1182
        %v1191 = vmul.f32 %v1188, %v1181
        %v1192 = vadd.f32 %v1172, %v1190
        %v1193 = vadd.f32 %v1173, %v1191
        %1194 = vrot.lane.b32.xlu0 %v519, 111
        %v1195 = vpop.permute.xlu0 %1194
        %1196 = vrot.lane.b32.xlu0 %v520, 111
        %v1197 = vpop.permute.xlu0 %1196
        %1198 = vrot.lane.b32.xlu0 0.0, 111
        %v1199 = vpop.permute.xlu0 %1198
        %vm1200 = vcmp.lt.s32.totalorder %v333, 111
        %v1201 = vsel %vm1200, %v1197, %v1199
        %v1202 = vsel %vm1200, %v1195, %v1197
        %s1203 = scalar_lea.vmem %s6, 64
        %v1204 = vld [vmem:[%s1203] sm:$0x3]
        %1206 = vset.pattern.permute.xlu0 0
        %1207 = vperm.xlu0 %1206, %v1204
        %v1208 = vpop.permute.xlu0 %1207
        %v1210 = vmul.f32 %v1208, %v1202
        %v1211 = vmul.f32 %v1208, %v1201
        %v1212 = vadd.f32 %v1192, %v1210
        %v1213 = vadd.f32 %v1193, %v1211
        %1214 = vrot.lane.b32.xlu0 %v519, 95
        %v1215 = vpop.permute.xlu0 %1214
        %1216 = vrot.lane.b32.xlu0 %v520, 95
        %v1217 = vpop.permute.xlu0 %1216
        %1218 = vrot.lane.b32.xlu0 0.0, 95
        %v1219 = vpop.permute.xlu0 %1218
        %vm1220 = vcmp.lt.s32.totalorder %v333, 95
        %v1221 = vsel %vm1220, %v1217, %v1219
        %v1222 = vsel %vm1220, %v1215, %v1217
        %s1223 = scalar_lea.vmem %s6, 78
        %v1224 = vld [vmem:[%s1223] sm:$0x3]
        %1226 = vset.pattern.permute.xlu0 0
        %1227 = vperm.xlu0 %1226, %v1224
        %v1228 = vpop.permute.xlu0 %1227
        %v1230 = vmul.f32 %v1228, %v1222
        %v1231 = vmul.f32 %v1228, %v1221
        %v1232 = vadd.f32 %v1212, %v1230
        %v1233 = vadd.f32 %v1213, %v1231
        %1234 = vrot.lane.b32.xlu0 %v519, 79
        %v1235 = vpop.permute.xlu0 %1234
        %1236 = vrot.lane.b32.xlu0 %v520, 79
        %v1237 = vpop.permute.xlu0 %1236
        %1238 = vrot.lane.b32.xlu0 0.0, 79
        %v1239 = vpop.permute.xlu0 %1238
        %vm1240 = vcmp.lt.s32.totalorder %v333, 79
        %v1241 = vsel %vm1240, %v1237, %v1239
        %v1242 = vsel %vm1240, %v1235, %v1237
        %s1243 = scalar_lea.vmem %s6, 92
        %v1244 = vld [vmem:[%s1243] sm:$0x3]
        %1246 = vset.pattern.permute.xlu0 0
        %1247 = vperm.xlu0 %1246, %v1244
        %v1248 = vpop.permute.xlu0 %1247
        %v1250 = vmul.f32 %v1248, %v1242
        %v1251 = vmul.f32 %v1248, %v1241
        %v1252 = vadd.f32 %v1232, %v1250
        %v1253 = vadd.f32 %v1233, %v1251
        %s1254 = scalar_lea.vmem [#allocation2], 4
        %v1255 = vld [vmem:[%s1254] ss:$8 sm:$0xf]
        %v1257 = vperm.slane %v1255, 1
        %v1258 = vperm.slane %v1255, 2
        %v1261 = vmul.f32 %v1252, %v1257
        %v1262 = vmul.f32 %v1253, %v1258
        %v1263 = vadd.f32 %v1112, %v1261
        %v1264 = vadd.f32 %v1113, %v1262
        %1265 = vrot.lane.b32.xlu0 0.0, 46
        %v1266 = vpop.permute.xlu0 %1265
        %1267 = vrot.lane.b32.xlu0 %v519, 46
        %v1268 = vpop.permute.xlu0 %1267
        %1269 = vrot.lane.b32.xlu0 %v520, 46
        %v1270 = vpop.permute.xlu0 %1269
        %vm1271 = vcmp.lt.s32.totalorder %v333, 46
        %v1272 = vsel %vm1271, %v1268, %v1270
        %v1273 = vsel %vm1271, %v1266, %v1268
        %s1274 = scalar_lea.vmem %s6, 10
        %v1275 = vld [vmem:[%s1274] sm:$0x3]
        %1277 = vset.pattern.permute.xlu0 0
        %1278 = vperm.xlu0 %1277, %v1275
        %v1279 = vpop.permute.xlu0 %1278
        %v1281 = vmul.f32 %v1279, %v1273
        %v1282 = vmul.f32 %v1279, %v1272
        %v1283 = vadd.f32 %v1281, 0.0
        %v1284 = vadd.f32 %v1282, 0.0
        %1285 = vrot.lane.b32.xlu0 0.0, 30
        %v1286 = vpop.permute.xlu0 %1285
        %1287 = vrot.lane.b32.xlu0 %v519, 30
        %v1288 = vpop.permute.xlu0 %1287
        %1289 = vrot.lane.b32.xlu0 %v520, 30
        %v1290 = vpop.permute.xlu0 %1289
        %vm1291 = vcmp.lt.s32.totalorder %v333, 30
        %v1292 = vsel %vm1291, %v1288, %v1290
        %v1293 = vsel %vm1291, %v1286, %v1288
        %s1294 = scalar_lea.vmem %s6, 24
        %v1295 = vld [vmem:[%s1294] sm:$0x3]
        %1297 = vset.pattern.permute.xlu0 0
        %1298 = vperm.xlu0 %1297, %v1295
        %v1299 = vpop.permute.xlu0 %1298
        %v1301 = vmul.f32 %v1299, %v1293
        %v1302 = vmul.f32 %v1299, %v1292
        %v1303 = vadd.f32 %v1283, %v1301
        %v1304 = vadd.f32 %v1284, %v1302
        %1305 = vrot.lane.b32.xlu0 0.0, 14
        %v1306 = vpop.permute.xlu0 %1305
        %1307 = vrot.lane.b32.xlu0 %v519, 14
        %v1308 = vpop.permute.xlu0 %1307
        %1309 = vrot.lane.b32.xlu0 %v520, 14
        %v1310 = vpop.permute.xlu0 %1309
        %vm1311 = vcmp.lt.s32.totalorder %v333, 14
        %v1312 = vsel %vm1311, %v1308, %v1310
        %v1313 = vsel %vm1311, %v1306, %v1308
        %s1314 = scalar_lea.vmem %s6, 38
        %v1315 = vld [vmem:[%s1314] sm:$0x3]
        %1317 = vset.pattern.permute.xlu0 0
        %1318 = vperm.xlu0 %1317, %v1315
        %v1319 = vpop.permute.xlu0 %1318
        %v1321 = vmul.f32 %v1319, %v1313
        %v1322 = vmul.f32 %v1319, %v1312
        %v1323 = vadd.f32 %v1303, %v1321
        %v1324 = vadd.f32 %v1304, %v1322
        %1325 = vrot.lane.b32.xlu0 %v519, 126
        %v1326 = vpop.permute.xlu0 %1325
        %1327 = vrot.lane.b32.xlu0 %v520, 126
        %v1328 = vpop.permute.xlu0 %1327
        %1329 = vrot.lane.b32.xlu0 0.0, 126
        %v1330 = vpop.permute.xlu0 %1329
        %vm1331 = vcmp.lt.s32.totalorder %v333, 126
        %v1332 = vsel %vm1331, %v1328, %v1330
        %v1333 = vsel %vm1331, %v1326, %v1328
        %s1334 = scalar_lea.vmem %s6, 52
        %v1335 = vld [vmem:[%s1334] sm:$0x3]
        %1337 = vset.pattern.permute.xlu0 0
        %1338 = vperm.xlu0 %1337, %v1335
        %v1339 = vpop.permute.xlu0 %1338
        %v1341 = vmul.f32 %v1339, %v1333
        %v1342 = vmul.f32 %v1339, %v1332
        %v1343 = vadd.f32 %v1323, %v1341
        %v1344 = vadd.f32 %v1324, %v1342
        %1345 = vrot.lane.b32.xlu0 %v519, 110
        %v1346 = vpop.permute.xlu0 %1345
        %1347 = vrot.lane.b32.xlu0 %v520, 110
        %v1348 = vpop.permute.xlu0 %1347
        %1349 = vrot.lane.b32.xlu0 0.0, 110
        %v1350 = vpop.permute.xlu0 %1349
        %vm1351 = vcmp.lt.s32.totalorder %v333, 110
        %v1352 = vsel %vm1351, %v1348, %v1350
        %v1353 = vsel %vm1351, %v1346, %v1348
        %s1354 = scalar_lea.vmem %s6, 66
        %v1355 = vld [vmem:[%s1354] sm:$0x3]
        %1357 = vset.pattern.permute.xlu0 0
        %1358 = vperm.xlu0 %1357, %v1355
        %v1359 = vpop.permute.xlu0 %1358
        %v1361 = vmul.f32 %v1359, %v1353
        %v1362 = vmul.f32 %v1359, %v1352
        %v1363 = vadd.f32 %v1343, %v1361
        %v1364 = vadd.f32 %v1344, %v1362
        %1365 = vrot.lane.b32.xlu0 %v519, 94
        %v1366 = vpop.permute.xlu0 %1365
        %1367 = vrot.lane.b32.xlu0 %v520, 94
        %v1368 = vpop.permute.xlu0 %1367
        %1369 = vrot.lane.b32.xlu0 0.0, 94
        %v1370 = vpop.permute.xlu0 %1369
        %vm1371 = vcmp.lt.s32.totalorder %v333, 94
        %v1372 = vsel %vm1371, %v1368, %v1370
        %v1373 = vsel %vm1371, %v1366, %v1368
        %s1374 = scalar_lea.vmem %s6, 80
        %v1375 = vld [vmem:[%s1374] sm:$0x3]
        %1377 = vset.pattern.permute.xlu0 0
        %1378 = vperm.xlu0 %1377, %v1375
        %v1379 = vpop.permute.xlu0 %1378
        %v1381 = vmul.f32 %v1379, %v1373
        %v1382 = vmul.f32 %v1379, %v1372
        %v1383 = vadd.f32 %v1363, %v1381
        %v1384 = vadd.f32 %v1364, %v1382
        %1385 = vrot.lane.b32.xlu0 %v519, 78
        %v1386 = vpop.permute.xlu0 %1385
        %1387 = vrot.lane.b32.xlu0 %v520, 78
        %v1388 = vpop.permute.xlu0 %1387
        %1389 = vrot.lane.b32.xlu0 0.0, 78
        %v1390 = vpop.permute.xlu0 %1389
        %vm1391 = vcmp.lt.s32.totalorder %v333, 78
        %v1392 = vsel %vm1391, %v1388, %v1390
        %v1393 = vsel %vm1391, %v1386, %v1388
        %s1394 = scalar_lea.vmem %s6, 94
        %v1395 = vld [vmem:[%s1394] sm:$0x3]
        %1397 = vset.pattern.permute.xlu0 0
        %1398 = vperm.xlu0 %1397, %v1395
        %v1399 = vpop.permute.xlu0 %1398
        %v1401 = vmul.f32 %v1399, %v1393
        %v1402 = vmul.f32 %v1399, %v1392
        %v1403 = vadd.f32 %v1383, %v1401
        %v1404 = vadd.f32 %v1384, %v1402
        %s1405 = scalar_lea.vmem [#allocation2], 5
        %v1406 = vld [vmem:[%s1405] ss:$8 sm:$0xf]
        %v1408 = vperm.slane %v1406, 1
        %v1409 = vperm.slane %v1406, 2
        %v1412 = vmul.f32 %v1403, %v1408
        %v1413 = vmul.f32 %v1404, %v1409
        %v1414 = vadd.f32 %v1263, %v1412
        %v1415 = vadd.f32 %v1264, %v1413
        %1416 = vrot.lane.b32.xlu0 0.0, 45
        %v1417 = vpop.permute.xlu0 %1416
        %1418 = vrot.lane.b32.xlu0 %v519, 45
        %v1419 = vpop.permute.xlu0 %1418
        %1420 = vrot.lane.b32.xlu0 %v520, 45
        %v1421 = vpop.permute.xlu0 %1420
        %vm1422 = vcmp.lt.s32.totalorder %v333, 45
        %v1423 = vsel %vm1422, %v1419, %v1421
        %v1424 = vsel %vm1422, %v1417, %v1419
        %s1425 = scalar_lea.vmem %s6, 12
        %v1426 = vld [vmem:[%s1425] sm:$0x3]
        %1428 = vset.pattern.permute.xlu0 0
        %1429 = vperm.xlu0 %1428, %v1426
        %v1430 = vpop.permute.xlu0 %1429
        %v1432 = vmul.f32 %v1430, %v1424
        %v1433 = vmul.f32 %v1430, %v1423
        %v1434 = vadd.f32 %v1432, 0.0
        %v1435 = vadd.f32 %v1433, 0.0
        %1436 = vrot.lane.b32.xlu0 0.0, 29
        %v1437 = vpop.permute.xlu0 %1436
        %1438 = vrot.lane.b32.xlu0 %v519, 29
        %v1439 = vpop.permute.xlu0 %1438
        %1440 = vrot.lane.b32.xlu0 %v520, 29
        %v1441 = vpop.permute.xlu0 %1440
        %vm1442 = vcmp.lt.s32.totalorder %v333, 29
        %v1443 = vsel %vm1442, %v1439, %v1441
        %v1444 = vsel %vm1442, %v1437, %v1439
        %s1445 = scalar_lea.vmem %s6, 26
        %v1446 = vld [vmem:[%s1445] sm:$0x3]
        %1448 = vset.pattern.permute.xlu0 0
        %1449 = vperm.xlu0 %1448, %v1446
        %v1450 = vpop.permute.xlu0 %1449
        %v1452 = vmul.f32 %v1450, %v1444
        %v1453 = vmul.f32 %v1450, %v1443
        %v1454 = vadd.f32 %v1434, %v1452
        %v1455 = vadd.f32 %v1435, %v1453
        %1456 = vrot.lane.b32.xlu0 0.0, 13
        %v1457 = vpop.permute.xlu0 %1456
        %1458 = vrot.lane.b32.xlu0 %v519, 13
        %v1459 = vpop.permute.xlu0 %1458
        %1460 = vrot.lane.b32.xlu0 %v520, 13
        %v1461 = vpop.permute.xlu0 %1460
        %vm1462 = vcmp.lt.s32.totalorder %v333, 13
        %v1463 = vsel %vm1462, %v1459, %v1461
        %v1464 = vsel %vm1462, %v1457, %v1459
        %s1465 = scalar_lea.vmem %s6, 40
        %v1466 = vld [vmem:[%s1465] sm:$0x3]
        %1468 = vset.pattern.permute.xlu0 0
        %1469 = vperm.xlu0 %1468, %v1466
        %v1470 = vpop.permute.xlu0 %1469
        %v1472 = vmul.f32 %v1470, %v1464
        %v1473 = vmul.f32 %v1470, %v1463
        %v1474 = vadd.f32 %v1454, %v1472
        %v1475 = vadd.f32 %v1455, %v1473
        %1476 = vrot.lane.b32.xlu0 %v519, 125
        %v1477 = vpop.permute.xlu0 %1476
        %1478 = vrot.lane.b32.xlu0 %v520, 125
        %v1479 = vpop.permute.xlu0 %1478
        %1480 = vrot.lane.b32.xlu0 0.0, 125
        %v1481 = vpop.permute.xlu0 %1480
        %vm1482 = vcmp.lt.s32.totalorder %v333, 125
        %v1483 = vsel %vm1482, %v1479, %v1481
        %v1484 = vsel %vm1482, %v1477, %v1479
        %s1485 = scalar_lea.vmem %s6, 54
        %v1486 = vld [vmem:[%s1485] sm:$0x3]
        %1488 = vset.pattern.permute.xlu0 0
        %1489 = vperm.xlu0 %1488, %v1486
        %v1490 = vpop.permute.xlu0 %1489
        %v1492 = vmul.f32 %v1490, %v1484
        %v1493 = vmul.f32 %v1490, %v1483
        %v1494 = vadd.f32 %v1474, %v1492
        %v1495 = vadd.f32 %v1475, %v1493
        %1496 = vrot.lane.b32.xlu0 %v519, 109
        %v1497 = vpop.permute.xlu0 %1496
        %1498 = vrot.lane.b32.xlu0 %v520, 109
        %v1499 = vpop.permute.xlu0 %1498
        %1500 = vrot.lane.b32.xlu0 0.0, 109
        %v1501 = vpop.permute.xlu0 %1500
        %vm1502 = vcmp.lt.s32.totalorder %v333, 109
        %v1503 = vsel %vm1502, %v1499, %v1501
        %v1504 = vsel %vm1502, %v1497, %v1499
        %s1505 = scalar_lea.vmem %s6, 68
        %v1506 = vld [vmem:[%s1505] sm:$0x3]
        %1508 = vset.pattern.permute.xlu0 0
        %1509 = vperm.xlu0 %1508, %v1506
        %v1510 = vpop.permute.xlu0 %1509
        %v1512 = vmul.f32 %v1510, %v1504
        %v1513 = vmul.f32 %v1510, %v1503
        %v1514 = vadd.f32 %v1494, %v1512
        %v1515 = vadd.f32 %v1495, %v1513
        %1516 = vrot.lane.b32.xlu0 %v519, 93
        %v1517 = vpop.permute.xlu0 %1516
        %1518 = vrot.lane.b32.xlu0 %v520, 93
        %v1519 = vpop.permute.xlu0 %1518
        %1520 = vrot.lane.b32.xlu0 0.0, 93
        %v1521 = vpop.permute.xlu0 %1520
        %vm1522 = vcmp.lt.s32.totalorder %v333, 93
        %v1523 = vsel %vm1522, %v1519, %v1521
        %v1524 = vsel %vm1522, %v1517, %v1519
        %s1525 = scalar_lea.vmem %s6, 82
        %v1526 = vld [vmem:[%s1525] sm:$0x3]
        %1528 = vset.pattern.permute.xlu0 0
        %1529 = vperm.xlu0 %1528, %v1526
        %v1530 = vpop.permute.xlu0 %1529
        %v1532 = vmul.f32 %v1530, %v1524
        %v1533 = vmul.f32 %v1530, %v1523
        %v1534 = vadd.f32 %v1514, %v1532
        %v1535 = vadd.f32 %v1515, %v1533
        %1536 = vrot.lane.b32.xlu0 %v519, 77
        %v1537 = vpop.permute.xlu0 %1536
        %1538 = vrot.lane.b32.xlu0 %v520, 77
        %v1539 = vpop.permute.xlu0 %1538
        %1540 = vrot.lane.b32.xlu0 0.0, 77
        %v1541 = vpop.permute.xlu0 %1540
        %vm1542 = vcmp.lt.s32.totalorder %v333, 77
        %v1543 = vsel %vm1542, %v1539, %v1541
        %v1544 = vsel %vm1542, %v1537, %v1539
        %s1545 = scalar_lea.vmem %s6, 96
        %v1546 = vld [vmem:[%s1545] sm:$0x3]
        %1548 = vset.pattern.permute.xlu0 0
        %1549 = vperm.xlu0 %1548, %v1546
        %v1550 = vpop.permute.xlu0 %1549
        %v1552 = vmul.f32 %v1550, %v1544
        %v1553 = vmul.f32 %v1550, %v1543
        %v1554 = vadd.f32 %v1534, %v1552
        %v1555 = vadd.f32 %v1535, %v1553
        %s1556 = scalar_lea.vmem [#allocation2], 6
        %v1557 = vld [vmem:[%s1556] ss:$8 sm:$0xf]
        %v1559 = vperm.slane %v1557, 1
        %v1560 = vperm.slane %v1557, 2
        %v1563 = vmul.f32 %v1554, %v1559
        %v1564 = vmul.f32 %v1555, %v1560
        %v1565 = vadd.f32 %v1414, %v1563
        %v1566 = vadd.f32 %v1415, %v1564
        %v1569 = vrot.slane %v1565, 1
        %v1570 = vrot.slane %v1566, 1
        %v1573 = vadd.f32 %v1565, %v1569
        %v1574 = vadd.f32 %v1566, %v1570
        %v1575 = vsel %vm360, %v1573, 0.0
        %v1576 = vsel %vm360, %v1574, 0.0
        %v1577 = vadd.f32 %v1575, %v1576
        %1578 = vadd.xlane.f32.xlu0 %v1577
        %v1579 = vpop.xlane.xlu0 %1578
        %v1580 = vmul.f32 %v1579, 0.00390625
        %v1581 = vsub.f32 %v1573, %v1580
        %v1582 = vsub.f32 %v1574, %v1580
        %v1583 = vmul.f32 %v1581, %v1581
        %v1584 = vmul.f32 %v1582, %v1582
        %v1585 = vsel %vm360, %v1583, 0.0
        %v1586 = vsel %vm360, %v1584, 0.0
        %v1587 = vadd.f32 %v1585, %v1586
        %1588 = vadd.xlane.f32.xlu0 %v1587
        %v1589 = vpop.xlane.xlu0 %1588
        %v1590 = vmul.f32 %v1589, 0.00390625
        %v1591 = vadd.f32 %v1590, 1e-05
        %v1592 = vrsqrt.pop %v1591
        %v1593 = vmul.f32 %v1592, %v1591
        %v1594 = vmul.f32 %v1593, %v1592
        %v1595 = vmul.f32 0.5, %v1594
        %v1596 = vsub.f32 1.5, %v1595
        %v1597 = vmul.f32 %v1592, %v1596
        %vm1598 = vweird.f32 %v1591
        %vm1599 = vweird.f32 %v1592
        %vm1600 = vmor %vm1598, %vm1599
        %v1601 = vsel %vm1600, %v1592, %v1597
        %v1602 = vmul.f32 %v1581, %v1601
        %v1603 = vmul.f32 %v1582, %v1601
        %v1604 = vxor.u32 %v1602, 2147483648
        %v1605 = vxor.u32 %v1603, 2147483648
        %v1606 = vmul.f32 %v1604, 1.442695
        %v1607 = vpow.pop %v1606
        %v1608 = vmul.f32 %v1605, 1.442695
        %v1609 = vpow.pop %v1608
        %v1610 = vadd.f32 %v1607, 1.0
        %v1611 = vadd.f32 %v1609, 1.0
        %v1612 = vrcp.pop %v1610
        %v1613 = vmul.f32 %v1610, %v1612
        %v1614 = vsub.f32 1.0, %v1613
        %v1615 = vmul.f32 %v1612, %v1614
        %v1616 = vadd.f32 %v1612, %v1615
        %vm1617 = vweird.f32 %v1610
        %vm1618 = vweird.f32 %v1612
        %vm1619 = vmor %vm1617, %vm1618
        %v1620 = vsel %vm1619, %v1612, %v1616
        %v1621 = vand.u32 2147483647, %v1610
        %vm1622 = vcmp.eq.f32.partialorder %v1621, 8.507059e+37
        %v1623 = vand.u32 %v1610, 2147483648
        %v1624 = vor.u32 1.1754944e-38, %v1623
        %v1625 = vsel %vm1622, %v1624, %v1620
        %v1626 = vmul.f32 1.0, %v1625
        %v1627 = vrcp.pop %v1611
        %v1628 = vmul.f32 %v1611, %v1627
        %v1629 = vsub.f32 1.0, %v1628
        %v1630 = vmul.f32 %v1627, %v1629
        %v1631 = vadd.f32 %v1627, %v1630
        %vm1632 = vweird.f32 %v1611
        %vm1633 = vweird.f32 %v1627
        %vm1634 = vmor %vm1632, %vm1633
        %v1635 = vsel %vm1634, %v1627, %v1631
        %v1636 = vand.u32 2147483647, %v1611
        %vm1637 = vcmp.eq.f32.partialorder %v1636, 8.507059e+37
        %v1638 = vand.u32 %v1611, 2147483648
        %v1639 = vor.u32 1.1754944e-38, %v1638
        %v1640 = vsel %vm1637, %v1639, %v1635
        %v1641 = vmul.f32 1.0, %v1640
        %v1642 = vperm.slane %v1626, 0
        %v1643 = vperm.slane %v1641, 0
        %v1644 = vmul.f32 %v473, %v1642
        %v1645 = vmul.f32 %v474, %v1643
        %v1646 = vmul.f32 %v475, %v1642
        %v1647 = vmul.f32 %v476, %v1643
        %v1648 = vmul.f32 %v477, %v1642
        %v1649 = vmul.f32 %v478, %v1643
        %v1650 = vmul.f32 %v479, %v1642
        %v1651 = vmul.f32 %v480, %v1643
        %1652 = vst [vmem:[%s286] sm:$0xff] %v1644
        %1653 = vst [vmem:[%s286 + $0x8] sm:$0xff] %v1645
        %1654 = vst [vmem:[%s286 + $0x10] sm:$0xff] %v1646
        %1655 = vst [vmem:[%s286 + $0x18] sm:$0xff] %v1647
        %1656 = vst [vmem:[%s286 + $0x20] sm:$0xff] %v1648
        %1657 = vst [vmem:[%s286 + $0x28] sm:$0xff] %v1649
        %1658 = vst [vmem:[%s286 + $0x30] sm:$0xff] %v1650
        %1659 = vst [vmem:[%s286 + $0x38] sm:$0xff] %v1651
        %s1660 = sand.u32 %s182, 1
        %s1661 = scalar_lea.sflag [#allocation4], %s1660
        %s1662 = sand.u32 %s182, 1
        %s1663 = smul.addr %s1662, 64
        %s1664 = scalar_lea.vmem [#allocation5], %s1663
        // Predicated region
        $region53: #{tpu_custom_call.1} parent=47 // pred_check
          %p1665 = pneg %p192
        $region54: #{tpu_custom_call.1} parent=47 // pred_check_branch
          %1667 = sbr.rel (%p1665) target = $region56
        $region55: #{tpu_custom_call.1} parent=47 // pred_region
          %1669 = vsyncadd %s1661, 0
          %s1670 = smul.addr %s22, 8
          %s1671 = smul.addr %s1670, 8
          %s1672 = scalar_lea.hbm %s7, %s1671
          %s1673 = sshll.u32 %s1664, 4
          %s1674 = int_to_ptr.vmem [resolvable:$true] %s1673
          %s1675 = sshll.u32 %s1672, 4
          %s1676 = int_to_ptr.hbm [resolvable:$true] %s1675
          %1681 = dma.vmem_to_hbm [thread:$0]  %s1674, 1024, %s1676, %s1661, 256, 256, 16
        $region56: #{tpu_custom_call.1} parent=47 // pred_fallthru
          _
      $region48: #{tpu_custom_call.1} parent=5 // pred_fallthru
        _
      %p1682 = scmp.le.s32.totalorder 2, %s17
      // Predicated region
      $region57: #{tpu_custom_call.1} parent=5 // pred_check
        %p1683 = pneg %p1682
      $region58: #{tpu_custom_call.1} parent=5 // pred_check_branch
        %1685 = sbr.rel (%p1683) target = $region60
      $region59: #{tpu_custom_call.1} parent=5 // pred_region
        %s1686 = ssub.s32 %s17, 2
        // Predicated region
        $region61: #{tpu_custom_call.1} parent=59 // pred_check
          %p1687 = pneg %p198
        $region62: #{tpu_custom_call.1} parent=59 // pred_check_branch
          %1689 = sbr.rel (%p1687) target = $region64
        $region63: #{tpu_custom_call.1} parent=59 // pred_region
          %s1690 = sand.u32 %s183, 1
          %s1691 = scalar_lea.sflag [#allocation4], %s1690
          %s1692 = sand.u32 %s183, 1
          %s1693 = smul.addr %s1692, 64
          %s1694 = scalar_lea.vmem [#allocation5], %s1693
          %1696 = dma.done %s1691, 1024
        $region64: #{tpu_custom_call.1} parent=59 // pred_fallthru
          _
      $region60: #{tpu_custom_call.1} parent=5 // pred_fallthru
        _
    $region6: #{tpu_custom_call.1} parent=1 // loop_footer
      %s21 = sadd.s32 1, %s17
    $region7: #{tpu_custom_call.1} parent=1 // loop_footer_branch
      %16 = sbr.rel target = $region3
    $region8: #{tpu_custom_call.1} parent=1 // loop_exit
      _
    %1697 = vsyncpa [#allocation3], 1
    %s1698 = scalar_lea.sflag [#allocation3], 1
    %1699 = vsyncpa %s1698, 1
    %1700 = vsyncpa [#allocation4], 1
    %s1701 = scalar_lea.sflag [#allocation4], 1
    %1702 = vsyncpa %s1701, 1

</llo_original>
